<compile_context>
chip_gen: v6e
topology: v6e:2x2x1
jax: 0.10.0
libtpu: 0.0.40
codegen_flags: <defaults>
</compile_context>

<pallas_src>
import jax
import jax.numpy as jnp
from jax.experimental import pallas as pl
from jax.experimental.pallas import tpu as pltpu


# -----------------------------------------------------------------------------
# Pallas kernel: the entire TGN forward (msg -> agg -> mem -> emb -> dec)
# -----------------------------------------------------------------------------
def tgn_forward_kernel(
    # inputs
    curr_time_ref,    # SMEM (1, 1)     f32
    raw_msg_ref,      # VMEM (N, Rs)    f32   [src_mem | dst_mem | t | node_id]
    node_ids_ref,     # VMEM (1, N)     i32   raw_msg_store[:, -1] (lane-dense)
    S_ref,            # VMEM (N, Ss)    f32   node memory (aliased to output 0)
    neigh_ref,        # VMEM (N, N)     i8    adjacency (cast in-kernel)
    edge_nodes_ref,   # VMEM (2E, 1)    i32   [src_0..src_E-1, dst_0..dst_E-1]
    gru_wx_ref,       # VMEM (2Ss+1, 3Ss) f32
    gru_wh_ref,       # VMEM (Ss, 3Ss)  f32
    gru_b_ref,        # VMEM (1, 3Ss)   f32
    emb_wself_ref,    # VMEM (Ss, Zs)   f32
    emb_wneigh_ref,   # VMEM (Ss, Zs)   f32
    emb_b_ref,        # VMEM (1, Zs)    f32
    dec_w1_ref,       # VMEM (2Zs, H)   f32
    dec_b1_ref,       # VMEM (1, H)     f32
    dec_w2row_ref,    # VMEM (1, H)     f32   dec_w2 as a lane row
    dec_b2_ref,       # VMEM (1, 1)     f32
    # outputs
    next_state_ref,   # VMEM (N, Ss)    f32
    edge_probs_ref,   # VMEM (1, E)     f32   lane-dense edge output
):
    n_msgs = raw_msg_ref.shape[0]
    n_nodes, ss = S_ref.shape
    two_e = edge_nodes_ref.shape[0]
    e = two_e // 2
    zs = emb_wself_ref.shape[1]

    raw = raw_msg_ref[...]
    S = S_ref[...]
    curr_time = curr_time_ref[0, 0]

    # ---- msg + agg (mean aggregation by stored node id) ----------------------
    # Node-major one-hot: onehot_t[n, m] = 1 iff message m is keyed to node n.
    row_iota = jax.lax.broadcasted_iota(jnp.int32, (n_nodes, n_msgs), 0)
    onehot_t = (row_iota == node_ids_ref[...]).astype(jnp.float32)    # (Nn, Nm)

    # Single MXU contraction yields [sum_mem | sum_t]; counts via a lane reduce
    # (XLU slot, essentially free) -- no aux concat, no 2-lane matmul.
    summed = jnp.dot(onehot_t, raw[:, : 2 * ss + 1],
                     preferred_element_type=jnp.float32)              # (Nn, 2Ss+1)
    cnt = jnp.sum(onehot_t, axis=1, keepdims=True)                    # (Nn, 1)
    inv_cnt = pl.reciprocal(jnp.maximum(cnt, 1.0), approx=False)      # exact (1e-4 tol)
    agg_mem = summed[:, : 2 * ss] * inv_cnt                           # (Nn, 2Ss)
    # mean(curr_time - t) == (curr_time*cnt - sum_t) * inv_cnt; exactly 0 if cnt==0.
    delta_agg = (curr_time * cnt - summed[:, 2 * ss : 2 * ss + 1]) * inv_cnt

    # ---- mem: GRU cell (two plain dots; delta_t column as a rank-1 VPU term) --
    gx = (jnp.dot(agg_mem, gru_wx_ref[: 2 * ss, :],
                  preferred_element_type=jnp.float32)
          + delta_agg * gru_wx_ref[2 * ss : 2 * ss + 1, :]
          + gru_b_ref[...])                                           # (Nn, 3Ss)
    gh = jnp.dot(S, gru_wh_ref[...], preferred_element_type=jnp.float32)

    z = jax.nn.sigmoid(gx[:, :ss] + gh[:, :ss])
    r = jax.nn.sigmoid(gx[:, ss:2 * ss] + gh[:, ss:2 * ss])
    n = jnp.tanh(gx[:, 2 * ss:] + r * gh[:, 2 * ss:])
    next_state = (1.0 - z) * n + z * S                                # (Nn, Ss)
    next_state_ref[...] = next_state

    # ---- emb: 1-hop embedding; bf16 adjacency matmul, two accumulating dots --
    a_bf = neigh_ref[...].astype(jnp.bfloat16)                        # 0/1 exact
    h_neigh = jnp.dot(a_bf, next_state.astype(jnp.bfloat16),
                      preferred_element_type=jnp.float32)             # (Nn, Ss)
    Z = jnp.maximum(
        jnp.dot(next_state, emb_wself_ref[...], preferred_element_type=jnp.float32)
        + jnp.dot(h_neigh, emb_wneigh_ref[...], preferred_element_type=jnp.float32)
        + emb_b_ref[...], 0.0)                                        # (Nn, Zs)

    # ---- fused src/dst gather in bf16 (one-hot is exact 0/1) ------------------
    e_iota = jax.lax.broadcasted_iota(jnp.int32, (two_e, n_nodes), 1)
    onehot_e = (e_iota == edge_nodes_ref[...]).astype(jnp.bfloat16)   # (2E, Nn)
    gathered = jnp.dot(onehot_e, Z.astype(jnp.bfloat16),
                       preferred_element_type=jnp.float32)            # (2E, Zs)

    # ---- dec: split W1 into src/dst halves (no z_pairs lane concat) ----------
    h1 = jnp.maximum(
        jnp.dot(gathered[:e, :], dec_w1_ref[:zs, :],
                preferred_element_type=jnp.float32)
        + jnp.dot(gathered[e:, :], dec_w1_ref[zs:, :],
                  preferred_element_type=jnp.float32)
        + dec_b1_ref[...], 0.0)                                       # (E, H)

    # Lane-dense logits: (1,H) x (E,H)^T -> (1,E) via trans_b dot_general.
    logits = jax.lax.dot_general(
        dec_w2row_ref[...], h1, (((1,), (1,)), ((), ())),
        preferred_element_type=jnp.float32) + dec_b2_ref[...]         # (1, E)
    edge_probs_ref[...] = jax.nn.sigmoid(logits)


# -----------------------------------------------------------------------------
# Wrapper
# -----------------------------------------------------------------------------
@jax.jit
def tgn_forward(curr_time, raw_msg_store, S, node_neighbors, batch_data, params):
    N, Ss = S.shape
    Rs = raw_msg_store.shape[1]
    Ms = 2 * Ss + 1
    Zs = params["emb_wself"].shape[1]
    H = params["dec_w1"].shape[1]
    E = batch_data.shape[0]

    edges = batch_data[:, :2].astype(jnp.int32)
    edge_nodes = jnp.concatenate([edges[:, 0], edges[:, 1]], axis=0).reshape(2 * E, 1)
    # Node ids are stored as f32 in raw_msg_store (exact only for ids < 2^24).
    node_ids_row = raw_msg_store[:, Rs - 1].astype(jnp.int32).reshape(1, N)
    ct = jnp.asarray(curr_time, jnp.float32).reshape(1, 1)
    dec_w2row = params["dec_w2"].reshape(1, H)

    flops = 2 * (N * N * Ms                     # aggregation contraction
                 + N * 2 * Ss * 3 * Ss          # GRU input dot
                 + N * Ss * 3 * Ss              # GRU hidden dot
                 + N * N * Ss                   # adjacency matmul
                 + 2 * N * Ss * Zs              # embedding self + neigh
                 + 2 * E * N * Zs               # src/dst gather
                 + E * 2 * Zs * H + E * H)      # decoder
    bytes_accessed = (4 * (1 + N * Rs + N + N * Ss + 2 * E
                           + Ms * 3 * Ss + Ss * 3 * Ss + 3 * Ss
                           + 2 * Ss * Zs + Zs + 2 * Zs * H + 2 * H + 1
                           + N * Ss + E)
                      + N * N)                  # int8 adjacency
    cost = pl.CostEstimate(flops=flops,
                           transcendentals=N * 3 * Ss + E,
                           bytes_accessed=bytes_accessed)

    out_shape = (
        jax.ShapeDtypeStruct((N, Ss), jnp.float32),     # next_state (aliases S)
        jax.ShapeDtypeStruct((1, E), jnp.float32),      # edge probs, lane-dense
    )
    in_specs = (
        [pl.BlockSpec(memory_space=pltpu.MemorySpace.SMEM)]
        + [pl.BlockSpec(memory_space=pltpu.MemorySpace.VMEM)] * 15
    )
    out_specs = (
        pl.BlockSpec(memory_space=pltpu.MemorySpace.VMEM),
        pl.BlockSpec(memory_space=pltpu.MemorySpace.VMEM),
    )
    next_state, probs_row = pl.pallas_call(
        tgn_forward_kernel,
        out_shape=out_shape,
        in_specs=in_specs,
        out_specs=out_specs,
        # TGN memory is overwritten every step: donate S's HBM buffer (input 3)
        # to next_state (output 0).
        input_output_aliases={3: 0},
        compiler_params=pltpu.CompilerParams(vmem_limit_bytes=64 * 1024 * 1024),
        cost_estimate=cost,
    )(
        ct, raw_msg_store, node_ids_row, S, node_neighbors, edge_nodes,
        params["gru_wx"], params["gru_wh"], params["gru_b"],
        params["emb_wself"], params["emb_wneigh"], params["emb_b"],
        params["dec_w1"], params["dec_b1"], dec_w2row, params["dec_b2"],
    )
    return next_state, probs_row.reshape(E, 1)


# -----------------------------------------------------------------------------
# Pure-JAX reference (module-faithful f32 math) for verification
# -----------------------------------------------------------------------------
def tgn_forward_ref(curr_time, raw_msg_store, S, node_neighbors, batch_data, params):
    N, Ss = S.shape
    Rs = raw_msg_store.shape[1]
    edges = batch_data[:, :2].astype(jnp.int32)

    delta_t = curr_time - raw_msg_store[:, 2 * Ss:2 * Ss + 1]
    msgs = jnp.concatenate([raw_msg_store[:, :2 * Ss], delta_t], axis=1)

    raw_nodes = raw_msg_store[:, Rs - 1].astype(jnp.int32)
    onehot = (jnp.arange(N)[:, None] == raw_nodes[None, :]).astype(jnp.float32)
    counts = onehot.sum(axis=1, keepdims=True)
    agg = (onehot @ msgs) / jnp.maximum(counts, 1.0)

    gx = agg @ params["gru_wx"] + params["gru_b"]
    gh = S @ params["gru_wh"]
    z = jax.nn.sigmoid(gx[:, :Ss] + gh[:, :Ss])
    r = jax.nn.sigmoid(gx[:, Ss:2 * Ss] + gh[:, Ss:2 * Ss])
    n = jnp.tanh(gx[:, 2 * Ss:] + r * gh[:, 2 * Ss:])
    next_state = (1.0 - z) * n + z * S

    A = node_neighbors.astype(jnp.float32)
    Z = jax.nn.relu(next_state @ params["emb_wself"]
                    + (A @ next_state) @ params["emb_wneigh"] + params["emb_b"])

    z_pairs = jnp.concatenate([Z[edges[:, 0], :], Z[edges[:, 1], :]], axis=1)
    h1 = jax.nn.relu(z_pairs @ params["dec_w1"] + params["dec_b1"])
    probs = jax.nn.sigmoid(h1 @ params["dec_w2"] + params["dec_b2"])
    return next_state, probs


# -----------------------------------------------------------------------------
# Main
# -----------------------------------------------------------------------------
if __name__ == "__main__":
    N, Ss = 64, 32          # nodes, memory dim   -> Zs=32, Rs=66, Ms=65
    Zs = Ss
    Rs = 2 * Ss + 2
    Ms = 2 * Ss + 1
    E = 8                   # edges in the batch
    H = 32                  # decoder hidden dim

    key = jax.random.PRNGKey(0)
    ks = jax.random.split(key, 16)

    def uni(k, shape, fan_in):
        bound = 1.0 / jnp.sqrt(float(fan_in))
        return jax.random.uniform(k, shape, jnp.float32, -bound, bound)

    params = {
        "gru_wx":     uni(ks[0], (Ms, 3 * Ss), Ms),
        "gru_wh":     uni(ks[1], (Ss, 3 * Ss), Ss),
        "gru_b":      uni(ks[2], (1, 3 * Ss), Ss),
        "emb_wself":  uni(ks[3], (Ss, Zs), Ss),
        "emb_wneigh": uni(ks[4], (Ss, Zs), Ss),
        "emb_b":      uni(ks[5], (1, Zs), Ss),
        "dec_w1":     uni(ks[6], (2 * Zs, H), 2 * Zs),
        "dec_b1":     uni(ks[7], (1, H), 2 * Zs),
        "dec_w2":     uni(ks[8], (H, 1), H),
        "dec_b2":     uni(ks[9], (1, 1), H),
    }

    # State (shapes from __init__), randomized so agg / emb paths are exercised.
    S = jax.random.uniform(ks[10], (N, Ss), jnp.float32)
    raw_msg_store = jax.random.uniform(ks[11], (N, Rs), jnp.float32)
    raw_msg_store = raw_msg_store.at[:, -1].set(
        jax.random.randint(ks[12], (N,), 0, N).astype(jnp.float32))      # node ids
    raw_msg_store = raw_msg_store.at[:, 2 * Ss].set(
        jax.random.uniform(ks[13], (N,), jnp.float32, 0.0, 10.0))        # timestamps
    node_neighbors = jax.random.bernoulli(ks[14], 0.1, (N, N)).astype(jnp.int8)
    batch_data = jax.random.randint(ks[15], (E, 3), 0, N).astype(jnp.int32)
    curr_time = 12.5

    next_state, edge_probs = tgn_forward(
        curr_time, raw_msg_store, S, node_neighbors, batch_data, params)
    jax.block_until_ready((next_state, edge_probs))

    ref_state, ref_probs = tgn_forward_ref(
        curr_time, raw_msg_store, S, node_neighbors, batch_data, params)

    # next_state is computed entirely in f32 -> tight tolerance.
    assert jnp.allclose(next_state, ref_state, atol=1e-4, rtol=1e-4), "next_state mismatch"
    # edge_probs goes through bf16 adjacency + bf16 gather matmuls -> ~2-3 digits.
    assert jnp.allclose(edge_probs, ref_probs, atol=1e-2, rtol=1e-2), "edge_probs mismatch"
    assert edge_probs.shape == (E, 1)

    print("KERNEL_OK")
</pallas_src>

<mosaic_0001>
module attributes {stable_mosaic.version = 11 : i64} {
  func.func @tgn_forward_kernel(%arg0: memref<1x1xf32, #tpu.memory_space<smem>>, %arg1: memref<64x66xf32, #tpu.memory_space<vmem>>, %arg2: memref<1x64xi32, #tpu.memory_space<vmem>>, %arg3: memref<64x32xf32, #tpu.memory_space<vmem>>, %arg4: memref<64x64xi8, #tpu.memory_space<vmem>>, %arg5: memref<16x1xi32, #tpu.memory_space<vmem>>, %arg6: memref<65x96xf32, #tpu.memory_space<vmem>>, %arg7: memref<32x96xf32, #tpu.memory_space<vmem>>, %arg8: memref<1x96xf32, #tpu.memory_space<vmem>>, %arg9: memref<32x32xf32, #tpu.memory_space<vmem>>, %arg10: memref<32x32xf32, #tpu.memory_space<vmem>>, %arg11: memref<1x32xf32, #tpu.memory_space<vmem>>, %arg12: memref<64x32xf32, #tpu.memory_space<vmem>>, %arg13: memref<1x32xf32, #tpu.memory_space<vmem>>, %arg14: memref<1x32xf32, #tpu.memory_space<vmem>>, %arg15: memref<1x1xf32, #tpu.memory_space<vmem>>, %arg16: memref<64x32xf32, #tpu.memory_space<vmem>>, %arg17: memref<1x8xf32, #tpu.memory_space<vmem>>) attributes {dimension_semantics = [], scalar_prefetch = 0 : i64, scratch_operands = 0 : i64, tpu.core_type = #tpu.core_type<tc>} {
    %c0 = arith.constant 0 : index
    %c0_0 = arith.constant 0 : index
    %0 = vector.load %arg1[%c0, %c0_0] : memref<64x66xf32, #tpu.memory_space<vmem>>, vector<64x66xf32>
    %c0_1 = arith.constant 0 : index
    %c0_2 = arith.constant 0 : index
    %1 = vector.load %arg3[%c0_1, %c0_2] : memref<64x32xf32, #tpu.memory_space<vmem>>, vector<64x32xf32>
    %c0_3 = arith.constant 0 : index
    %c0_4 = arith.constant 0 : index
    %2 = memref.load %arg0[%c0_3, %c0_4] : memref<1x1xf32, #tpu.memory_space<smem>>
    %3 = tpu.iota {dimensions = array<i32: 0>} : vector<64x64xi32>
    %c0_5 = arith.constant 0 : index
    %c0_6 = arith.constant 0 : index
    %4 = vector.load %arg2[%c0_5, %c0_6] : memref<1x64xi32, #tpu.memory_space<vmem>>, vector<1x64xi32>
    %5 = vector.broadcast %4 : vector<1x64xi32> to vector<64x64xi32>
    %6 = arith.cmpi eq, %3, %5 : vector<64x64xi32>
    %7 = arith.extui %6 : vector<64x64xi1> to vector<64x64xi32>
    %8 = arith.sitofp %7 : vector<64x64xi32> to vector<64x64xf32>
    %9 = vector.extract_strided_slice %0 {offsets = [0, 0], sizes = [64, 65], strides = [1, 1]} : vector<64x66xf32> to vector<64x65xf32>
    %cst = arith.constant dense<0.000000e+00> : vector<64x65xf32>
    %10 = tpu.matmul %8, %9, %cst {dimension_numbers = #tpu.dot_dimension_numbers<[1], [0], [0], [1], [0, 0, 1, 1], [], []>} : vector<64x64xf32>, vector<64x65xf32>, vector<64x65xf32> -> vector<64x65xf32>
    %cst_7 = arith.constant dense<0.000000e+00> : vector<64xf32>
    %11 = vector.multi_reduction <add>, %8, %cst_7 [1] : vector<64x64xf32> to vector<64xf32>
    %12 = vector.shape_cast %11 : vector<64xf32> to vector<64x1xf32>
    %cst_8 = arith.constant 1.000000e+00 : f32
    %13 = vector.broadcast %cst_8 : f32 to vector<64x1xf32>
    %14 = arith.maximumf %12, %13 : vector<64x1xf32>
    %15 = tpu.reciprocal %14 : vector<64x1xf32> -> vector<64x1xf32>
    %16 = vector.extract_strided_slice %10 {offsets = [0, 0], sizes = [64, 64], strides = [1, 1]} : vector<64x65xf32> to vector<64x64xf32>
    %17 = vector.broadcast %15 : vector<64x1xf32> to vector<64x64xf32>
    %18 = arith.mulf %16, %17 : vector<64x64xf32>
    %19 = vector.broadcast %2 : f32 to vector<64x1xf32>
    %20 = arith.mulf %19, %12 : vector<64x1xf32>
    %21 = vector.extract_strided_slice %10 {offsets = [0, 64], sizes = [64, 1], strides = [1, 1]} : vector<64x65xf32> to vector<64x1xf32>
    %22 = arith.subf %20, %21 : vector<64x1xf32>
    %23 = arith.mulf %22, %15 : vector<64x1xf32>
    %c0_9 = arith.constant 0 : index
    %c0_10 = arith.constant 0 : index
    %24 = vector.load %arg6[%c0_9, %c0_10] : memref<65x96xf32, #tpu.memory_space<vmem>>, vector<64x96xf32>
    %cst_11 = arith.constant dense<0.000000e+00> : vector<64x96xf32>
    %25 = tpu.matmul %18, %24, %cst_11 {dimension_numbers = #tpu.dot_dimension_numbers<[1], [0], [0], [1], [0, 0, 1, 1], [], []>} : vector<64x64xf32>, vector<64x96xf32>, vector<64x96xf32> -> vector<64x96xf32>
    %c64 = arith.constant 64 : index
    %c0_12 = arith.constant 0 : index
    %26 = vector.load %arg6[%c64, %c0_12] : memref<65x96xf32, #tpu.memory_space<vmem>>, vector<1x96xf32>
    %27 = vector.broadcast %23 : vector<64x1xf32> to vector<64x96xf32>
    %28 = vector.broadcast %26 : vector<1x96xf32> to vector<64x96xf32>
    %29 = arith.mulf %27, %28 : vector<64x96xf32>
    %30 = arith.addf %25, %29 : vector<64x96xf32>
    %c0_13 = arith.constant 0 : index
    %c0_14 = arith.constant 0 : index
    %31 = vector.load %arg8[%c0_13, %c0_14] : memref<1x96xf32, #tpu.memory_space<vmem>>, vector<1x96xf32>
    %32 = vector.broadcast %31 : vector<1x96xf32> to vector<64x96xf32>
    %33 = arith.addf %30, %32 : vector<64x96xf32>
    %c0_15 = arith.constant 0 : index
    %c0_16 = arith.constant 0 : index
    %34 = vector.load %arg7[%c0_15, %c0_16] : memref<32x96xf32, #tpu.memory_space<vmem>>, vector<32x96xf32>
    %cst_17 = arith.constant dense<0.000000e+00> : vector<64x96xf32>
    %35 = tpu.matmul %1, %34, %cst_17 {dimension_numbers = #tpu.dot_dimension_numbers<[1], [0], [0], [1], [0, 0, 1, 1], [], []>} : vector<64x32xf32>, vector<32x96xf32>, vector<64x96xf32> -> vector<64x96xf32>
    %36 = vector.extract_strided_slice %33 {offsets = [0, 0], sizes = [64, 32], strides = [1, 1]} : vector<64x96xf32> to vector<64x32xf32>
    %37 = vector.extract_strided_slice %35 {offsets = [0, 0], sizes = [64, 32], strides = [1, 1]} : vector<64x96xf32> to vector<64x32xf32>
    %38 = arith.addf %36, %37 : vector<64x32xf32>
    %39 = arith.negf %38 : vector<64x32xf32>
    %40 = math.exp %39 : vector<64x32xf32>
    %cst_18 = arith.constant 1.000000e+00 : f32
    %41 = vector.broadcast %cst_18 : f32 to vector<64x32xf32>
    %42 = arith.addf %41, %40 : vector<64x32xf32>
    %43 = arith.divf %41, %42 : vector<64x32xf32>
    %44 = vector.extract_strided_slice %33 {offsets = [0, 32], sizes = [64, 32], strides = [1, 1]} : vector<64x96xf32> to vector<64x32xf32>
    %45 = vector.extract_strided_slice %35 {offsets = [0, 32], sizes = [64, 32], strides = [1, 1]} : vector<64x96xf32> to vector<64x32xf32>
    %46 = arith.addf %44, %45 : vector<64x32xf32>
    %47 = arith.negf %46 : vector<64x32xf32>
    %48 = math.exp %47 : vector<64x32xf32>
    %cst_19 = arith.constant 1.000000e+00 : f32
    %49 = vector.broadcast %cst_19 : f32 to vector<64x32xf32>
    %50 = arith.addf %49, %48 : vector<64x32xf32>
    %51 = arith.divf %49, %50 : vector<64x32xf32>
    %52 = vector.extract_strided_slice %33 {offsets = [0, 64], sizes = [64, 32], strides = [1, 1]} : vector<64x96xf32> to vector<64x32xf32>
    %53 = vector.extract_strided_slice %35 {offsets = [0, 64], sizes = [64, 32], strides = [1, 1]} : vector<64x96xf32> to vector<64x32xf32>
    %54 = arith.mulf %51, %53 : vector<64x32xf32>
    %55 = arith.addf %52, %54 : vector<64x32xf32>
    %56 = math.tanh %55 : vector<64x32xf32>
    %cst_20 = arith.constant 1.000000e+00 : f32
    %57 = vector.broadcast %cst_20 : f32 to vector<64x32xf32>
    %58 = arith.subf %57, %43 : vector<64x32xf32>
    %59 = arith.mulf %58, %56 : vector<64x32xf32>
    %60 = arith.mulf %43, %1 : vector<64x32xf32>
    %61 = arith.addf %59, %60 : vector<64x32xf32>
    %c0_21 = arith.constant 0 : index
    %c0_22 = arith.constant 0 : index
    %62 = vector.load %arg16[%c0_21, %c0_22] : memref<64x32xf32, #tpu.memory_space<vmem>>, vector<64x32xf32>
    tpu.vector_store %arg16[%c0_21, %c0_22], %61 {strides = array<i32>} : memref<64x32xf32, #tpu.memory_space<vmem>>, vector<64x32xf32>,
    %c0_23 = arith.constant 0 : index
    %c0_24 = arith.constant 0 : index
    %63 = vector.load %arg4[%c0_23, %c0_24] : memref<64x64xi8, #tpu.memory_space<vmem>>, vector<64x64xi8>
    %64 = arith.sitofp %63 : vector<64x64xi8> to vector<64x64xbf16>
    %65 = arith.truncf %61 : vector<64x32xf32> to vector<64x32xbf16>
    %cst_25 = arith.constant dense<0.000000e+00> : vector<64x32xf32>
    %66 = tpu.matmul %64, %65, %cst_25 {dimension_numbers = #tpu.dot_dimension_numbers<[1], [0], [0], [1], [0, 0, 1, 1], [], []>} : vector<64x64xbf16>, vector<64x32xbf16>, vector<64x32xf32> -> vector<64x32xf32>
    %c0_26 = arith.constant 0 : index
    %c0_27 = arith.constant 0 : index
    %67 = vector.load %arg9[%c0_26, %c0_27] : memref<32x32xf32, #tpu.memory_space<vmem>>, vector<32x32xf32>
    %cst_28 = arith.constant dense<0.000000e+00> : vector<64x32xf32>
    %68 = tpu.matmul %61, %67, %cst_28 {dimension_numbers = #tpu.dot_dimension_numbers<[1], [0], [0], [1], [0, 0, 1, 1], [], []>} : vector<64x32xf32>, vector<32x32xf32>, vector<64x32xf32> -> vector<64x32xf32>
    %c0_29 = arith.constant 0 : index
    %c0_30 = arith.constant 0 : index
    %69 = vector.load %arg10[%c0_29, %c0_30] : memref<32x32xf32, #tpu.memory_space<vmem>>, vector<32x32xf32>
    %cst_31 = arith.constant dense<0.000000e+00> : vector<64x32xf32>
    %70 = tpu.matmul %66, %69, %cst_31 {dimension_numbers = #tpu.dot_dimension_numbers<[1], [0], [0], [1], [0, 0, 1, 1], [], []>} : vector<64x32xf32>, vector<32x32xf32>, vector<64x32xf32> -> vector<64x32xf32>
    %71 = arith.addf %68, %70 : vector<64x32xf32>
    %c0_32 = arith.constant 0 : index
    %c0_33 = arith.constant 0 : index
    %72 = vector.load %arg11[%c0_32, %c0_33] : memref<1x32xf32, #tpu.memory_space<vmem>>, vector<1x32xf32>
    %73 = vector.broadcast %72 : vector<1x32xf32> to vector<64x32xf32>
    %74 = arith.addf %71, %73 : vector<64x32xf32>
    %cst_34 = arith.constant 0.000000e+00 : f32
    %75 = vector.broadcast %cst_34 : f32 to vector<64x32xf32>
    %76 = arith.maximumf %74, %75 : vector<64x32xf32>
    %77 = tpu.iota {dimensions = array<i32: 1>} : vector<16x64xi32>
    %c0_35 = arith.constant 0 : index
    %c0_36 = arith.constant 0 : index
    %78 = vector.load %arg5[%c0_35, %c0_36] : memref<16x1xi32, #tpu.memory_space<vmem>>, vector<16x1xi32>
    %79 = vector.broadcast %78 : vector<16x1xi32> to vector<16x64xi32>
    %80 = arith.cmpi eq, %77, %79 : vector<16x64xi32>
    %81 = arith.extui %80 : vector<16x64xi1> to vector<16x64xi32>
    %82 = arith.sitofp %81 : vector<16x64xi32> to vector<16x64xf32>
    %83 = arith.truncf %82 : vector<16x64xf32> to vector<16x64xbf16>
    %84 = arith.truncf %76 : vector<64x32xf32> to vector<64x32xbf16>
    %cst_37 = arith.constant dense<0.000000e+00> : vector<16x32xf32>
    %85 = tpu.matmul %83, %84, %cst_37 {dimension_numbers = #tpu.dot_dimension_numbers<[1], [0], [0], [1], [0, 0, 1, 1], [], []>} : vector<16x64xbf16>, vector<64x32xbf16>, vector<16x32xf32> -> vector<16x32xf32>
    %86 = vector.extract_strided_slice %85 {offsets = [0, 0], sizes = [8, 32], strides = [1, 1]} : vector<16x32xf32> to vector<8x32xf32>
    %c0_38 = arith.constant 0 : index
    %c0_39 = arith.constant 0 : index
    %87 = vector.load %arg12[%c0_38, %c0_39] : memref<64x32xf32, #tpu.memory_space<vmem>>, vector<32x32xf32>
    %cst_40 = arith.constant dense<0.000000e+00> : vector<8x32xf32>
    %88 = tpu.matmul %86, %87, %cst_40 {dimension_numbers = #tpu.dot_dimension_numbers<[1], [0], [0], [1], [0, 0, 1, 1], [], []>} : vector<8x32xf32>, vector<32x32xf32>, vector<8x32xf32> -> vector<8x32xf32>
    %89 = vector.extract_strided_slice %85 {offsets = [8, 0], sizes = [8, 32], strides = [1, 1]} : vector<16x32xf32> to vector<8x32xf32>
    %c32 = arith.constant 32 : index
    %c0_41 = arith.constant 0 : index
    %90 = vector.load %arg12[%c32, %c0_41] : memref<64x32xf32, #tpu.memory_space<vmem>>, vector<32x32xf32>
    %cst_42 = arith.constant dense<0.000000e+00> : vector<8x32xf32>
    %91 = tpu.matmul %89, %90, %cst_42 {dimension_numbers = #tpu.dot_dimension_numbers<[1], [0], [0], [1], [0, 0, 1, 1], [], []>} : vector<8x32xf32>, vector<32x32xf32>, vector<8x32xf32> -> vector<8x32xf32>
    %92 = arith.addf %88, %91 : vector<8x32xf32>
    %c0_43 = arith.constant 0 : index
    %c0_44 = arith.constant 0 : index
    %93 = vector.load %arg13[%c0_43, %c0_44] : memref<1x32xf32, #tpu.memory_space<vmem>>, vector<1x32xf32>
    %94 = vector.broadcast %93 : vector<1x32xf32> to vector<8x32xf32>
    %95 = arith.addf %92, %94 : vector<8x32xf32>
    %cst_45 = arith.constant 0.000000e+00 : f32
    %96 = vector.broadcast %cst_45 : f32 to vector<8x32xf32>
    %97 = arith.maximumf %95, %96 : vector<8x32xf32>
    %c0_46 = arith.constant 0 : index
    %c0_47 = arith.constant 0 : index
    %98 = vector.load %arg14[%c0_46, %c0_47] : memref<1x32xf32, #tpu.memory_space<vmem>>, vector<1x32xf32>
    %cst_48 = arith.constant dense<0.000000e+00> : vector<1x8xf32>
    %99 = tpu.matmul %98, %97, %cst_48 {dimension_numbers = #tpu.dot_dimension_numbers<[1], [1], [0], [0], [0, 0, 1, 0], [], []>} : vector<1x32xf32>, vector<8x32xf32>, vector<1x8xf32> -> vector<1x8xf32>
    %c0_49 = arith.constant 0 : index
    %c0_50 = arith.constant 0 : index
    %100 = vector.load %arg15[%c0_49, %c0_50] : memref<1x1xf32, #tpu.memory_space<vmem>>, vector<1x1xf32>
    %101 = vector.broadcast %100 : vector<1x1xf32> to vector<1x8xf32>
    %102 = arith.addf %99, %101 : vector<1x8xf32>
    %103 = arith.negf %102 : vector<1x8xf32>
    %104 = math.exp %103 : vector<1x8xf32>
    %cst_51 = arith.constant 1.000000e+00 : f32
    %105 = vector.broadcast %cst_51 : f32 to vector<1x8xf32>
    %106 = arith.addf %105, %104 : vector<1x8xf32>
    %107 = arith.divf %105, %106 : vector<1x8xf32>
    %c0_52 = arith.constant 0 : index
    %c0_53 = arith.constant 0 : index
    %108 = vector.load %arg17[%c0_52, %c0_53] : memref<1x8xf32, #tpu.memory_space<vmem>>, vector<1x8xf32>
    tpu.vector_store %arg17[%c0_52, %c0_53], %107 {strides = array<i32>} : memref<1x8xf32, #tpu.memory_space<vmem>>, vector<1x8xf32>,
    return
  }
}

</mosaic_0001>

<llo_original>
// kernel: tgn_forward.1
$region0: #{tgn_forward.1}
  #allocation0 [shape = 'u32[]', space=smem, size = 0x4, offset = 0x4, fixed_abs, tag = 'smem constant byte address 0x4 - core index']
  #allocation1 [shape = 'u32[144,128]{1,0:T(1,128)}', space=vmem, size = 0x12000, scoped, tag = 'internal scratch']
  #allocation2 [shape = 'f32[1,1]{1,0:T(1,128)S(6)}', space=smem, size = 0x200, scoped, tag = 'scoped memory for tgn_forward.1']
  #allocation3 [shape = 'f32[1,1]{1,0:T(1,128)S(1)}', space=vmem, size = 0x200, scoped, tag = 'scoped memory for tgn_forward.1']
  %s0 = inlined_call_operand.<no memory space> [shape: f32[1,1], index: 0, kind: input, shape index: {}]
  %s1 = inlined_call_operand.vmem [shape: f32[64,66], index: 1, kind: input, shape index: {}]
  %s2 = inlined_call_operand.vmem [shape: s32[1,64], index: 2, kind: input, shape index: {}]
  %s3 = inlined_call_operand.vmem [shape: f32[64,32], index: 3, kind: input, shape index: {}, may-alias: {3,16}]
  %s4 = inlined_call_operand.hbm [shape: s8[64,64], index: 4, kind: input, shape index: {}]
  %s5 = inlined_call_operand.vmem [shape: s32[16,1], index: 5, kind: input, shape index: {}]
  %s6 = inlined_call_operand.vmem [shape: f32[65,96], index: 6, kind: input, shape index: {}]
  %s7 = inlined_call_operand.vmem [shape: f32[32,96], index: 7, kind: input, shape index: {}]
  %s8 = inlined_call_operand.vmem [shape: f32[1,96], index: 8, kind: input, shape index: {}]
  %s9 = inlined_call_operand.vmem [shape: f32[32,32], index: 9, kind: input, shape index: {}]
  %s10 = inlined_call_operand.vmem [shape: f32[32,32], index: 10, kind: input, shape index: {}]
  %s11 = inlined_call_operand.vmem [shape: f32[1,32], index: 11, kind: input, shape index: {}]
  %s12 = inlined_call_operand.vmem [shape: f32[64,32], index: 12, kind: input, shape index: {}]
  %s13 = inlined_call_operand.hbm [shape: f32[1,32], index: 13, kind: input, shape index: {}]
  %s14 = inlined_call_operand.vmem [shape: f32[1,32], index: 14, kind: input, shape index: {}]
  %s15 = inlined_call_operand.<no memory space> [shape: f32[1,1], index: 15, kind: input, shape index: {}]
  %s16 = inlined_call_operand.vmem [shape: f32[64,32], index: 16, kind: output, shape index: {0}, may-alias: {3,16}]
  %s17 = inlined_call_operand.hbm [shape: f32[1,8], index: 17, kind: output, shape index: {1}]
  %18 = xla_tuple %s16, %s17
  %s19 = sld [smem:[#allocation0]]
  $region90: #{tgn_forward.1} parent=0
    _
  %s21 = ssub.s32 1, %s19
  %s22 = scalar_select 0, %s21, %s19
  %23 = sst [smem:[#allocation2]] %s0
  %v24 = vstv %s15
  %25 = vst [vmem:[#allocation3] sm:$0x1] %v24
  $region1: #{tgn_forward.1} parent=0
    #allocation4 [shape = 'u8[8192]{0}', space=vmem, size = 0x2000, scoped, tag = 'input window, operand 4, single buffered']
    #allocation5 [shape = 's32[1]{0}', space=sflag, size = 0x4, scoped, tag = 'scoped memory for tgn_forward.1']
    #allocation6 [shape = 's32[1]{0}', space=sflag, size = 0x4, scoped, tag = 'scoped memory for tgn_forward.1']
    #allocation7 [shape = 'u8[512]{0}', space=vmem, size = 0x400, scoped, tag = 'input window, operand 13, single buffered']
    #allocation8 [shape = 's32[1]{0}', space=sflag, size = 0x4, scoped, tag = 'scoped memory for tgn_forward.1']
    #allocation9 [shape = 'u8[512]{0}', space=vmem, size = 0x400, scoped, tag = 'output window, operand 1, single buffered']
    %26 = vsyncpa [#allocation5], 0
    %27 = vsyncpa [#allocation8], 0
    %28 = vsyncpa [#allocation6], 0
    // Predicated region
    $region2: #{tgn_forward.1} parent=1 // pred_check
      _
    $region3: #{tgn_forward.1} parent=1 // pred_check_branch
      %30 = sbr.rel (0) target = $region5
    $region4: #{tgn_forward.1} parent=1 // pred_region
      _
    $region5: #{tgn_forward.1} parent=1 // pred_fallthru
      _
    // Predicated region
    $region6: #{tgn_forward.1} parent=1 // pred_check
      _
    $region7: #{tgn_forward.1} parent=1 // pred_check_branch
      %32 = sbr.rel (0) target = $region9
    $region8: #{tgn_forward.1} parent=1 // pred_region
      _
    $region9: #{tgn_forward.1} parent=1 // pred_fallthru
      _
    // Predicated region
    $region10: #{tgn_forward.1} parent=1 // pred_check
      _
    $region11: #{tgn_forward.1} parent=1 // pred_check_branch
      %34 = sbr.rel (0) target = $region13
    $region12: #{tgn_forward.1} parent=1 // pred_region
      _
    $region13: #{tgn_forward.1} parent=1 // pred_fallthru
      _
    // Predicated region
    $region14: #{tgn_forward.1} parent=1 // pred_check
      _
    $region15: #{tgn_forward.1} parent=1 // pred_check_branch
      %36 = sbr.rel (0) target = $region17
    $region16: #{tgn_forward.1} parent=1 // pred_region
      _
    $region17: #{tgn_forward.1} parent=1 // pred_fallthru
      _
    // Predicated region
    $region18: #{tgn_forward.1} parent=1 // pred_check
      _
    $region19: #{tgn_forward.1} parent=1 // pred_check_branch
      %38 = sbr.rel (0) target = $region21
    $region20: #{tgn_forward.1} parent=1 // pred_region
      %s40 = ssub.s32 256, 256
      %41 = vsyncadd [#allocation5], %s40
      %s42 = sshll.u32 [#allocation4], 4
      %s43 = int_to_ptr.vmem [resolvable:$true] %s42
      %48 = dma.hbm_to_vmem [thread:$0]  %s4, 256, %s43, [#allocation5], 128, 128, 8
    $region21: #{tgn_forward.1} parent=1 // pred_fallthru
      _
    // Predicated region
    $region22: #{tgn_forward.1} parent=1 // pred_check
      _
    $region23: #{tgn_forward.1} parent=1 // pred_check_branch
      %50 = sbr.rel (0) target = $region25
    $region24: #{tgn_forward.1} parent=1 // pred_region
      _
    $region25: #{tgn_forward.1} parent=1 // pred_fallthru
      _
    // Predicated region
    $region26: #{tgn_forward.1} parent=1 // pred_check
      _
    $region27: #{tgn_forward.1} parent=1 // pred_check_branch
      %52 = sbr.rel (0) target = $region29
    $region28: #{tgn_forward.1} parent=1 // pred_region
      _
    $region29: #{tgn_forward.1} parent=1 // pred_fallthru
      _
    // Predicated region
    $region30: #{tgn_forward.1} parent=1 // pred_check
      _
    $region31: #{tgn_forward.1} parent=1 // pred_check_branch
      %54 = sbr.rel (0) target = $region33
    $region32: #{tgn_forward.1} parent=1 // pred_region
      _
    $region33: #{tgn_forward.1} parent=1 // pred_fallthru
      _
    // Predicated region
    $region34: #{tgn_forward.1} parent=1 // pred_check
      _
    $region35: #{tgn_forward.1} parent=1 // pred_check_branch
      %56 = sbr.rel (0) target = $region37
    $region36: #{tgn_forward.1} parent=1 // pred_region
      _
    $region37: #{tgn_forward.1} parent=1 // pred_fallthru
      _
    // Predicated region
    $region38: #{tgn_forward.1} parent=1 // pred_check
      _
    $region39: #{tgn_forward.1} parent=1 // pred_check_branch
      %58 = sbr.rel (0) target = $region41
    $region40: #{tgn_forward.1} parent=1 // pred_region
      _
    $region41: #{tgn_forward.1} parent=1 // pred_fallthru
      _
    // Predicated region
    $region42: #{tgn_forward.1} parent=1 // pred_check
      _
    $region43: #{tgn_forward.1} parent=1 // pred_check_branch
      %60 = sbr.rel (0) target = $region45
    $region44: #{tgn_forward.1} parent=1 // pred_region
      _
    $region45: #{tgn_forward.1} parent=1 // pred_fallthru
      _
    // Predicated region
    $region46: #{tgn_forward.1} parent=1 // pred_check
      _
    $region47: #{tgn_forward.1} parent=1 // pred_check_branch
      %62 = sbr.rel (0) target = $region49
    $region48: #{tgn_forward.1} parent=1 // pred_region
      _
    $region49: #{tgn_forward.1} parent=1 // pred_fallthru
      _
    // Predicated region
    $region50: #{tgn_forward.1} parent=1 // pred_check
      _
    $region51: #{tgn_forward.1} parent=1 // pred_check_branch
      %64 = sbr.rel (0) target = $region53
    $region52: #{tgn_forward.1} parent=1 // pred_region
      _
    $region53: #{tgn_forward.1} parent=1 // pred_fallthru
      _
    // Predicated region
    $region54: #{tgn_forward.1} parent=1 // pred_check
      _
    $region55: #{tgn_forward.1} parent=1 // pred_check_branch
      %66 = sbr.rel (0) target = $region57
    $region56: #{tgn_forward.1} parent=1 // pred_region
      %s68 = ssub.s32 16, 16
      %69 = vsyncadd [#allocation8], %s68
      %s71 = sshll.u32 [#allocation7], 4
      %s72 = int_to_ptr.vmem [resolvable:$true] %s71
      %74 = dma.hbm_to_vmem [thread:$0]  %s13, 16, %s72, [#allocation8]
    $region57: #{tgn_forward.1} parent=1 // pred_fallthru
      _
    // Predicated region
    $region58: #{tgn_forward.1} parent=1 // pred_check
      _
    $region59: #{tgn_forward.1} parent=1 // pred_check_branch
      %76 = sbr.rel (0) target = $region61
    $region60: #{tgn_forward.1} parent=1 // pred_region
      _
    $region61: #{tgn_forward.1} parent=1 // pred_fallthru
      _
    // Predicated region
    $region62: #{tgn_forward.1} parent=1 // pred_check
      _
    $region63: #{tgn_forward.1} parent=1 // pred_check_branch
      %78 = sbr.rel (0) target = $region65
    $region64: #{tgn_forward.1} parent=1 // pred_region
      _
    $region65: #{tgn_forward.1} parent=1 // pred_fallthru
      _
    // Predicated region
    $region66: #{tgn_forward.1} parent=1 // pred_check
      _
    $region67: #{tgn_forward.1} parent=1 // pred_check_branch
      %80 = sbr.rel (0) target = $region69
    $region68: #{tgn_forward.1} parent=1 // pred_region
      %81 = dma.done [#allocation5], 256
    $region69: #{tgn_forward.1} parent=1 // pred_fallthru
      _
    // Predicated region
    $region70: #{tgn_forward.1} parent=1 // pred_check
      _
    $region71: #{tgn_forward.1} parent=1 // pred_check_branch
      %83 = sbr.rel (0) target = $region73
    $region72: #{tgn_forward.1} parent=1 // pred_region
      %84 = dma.done [#allocation8], 16
    $region73: #{tgn_forward.1} parent=1 // pred_fallthru
      _
    %v86 = vld [vmem:[%s1] sm:$0xff]
    %v87 = vld [vmem:[%s1 + $0x8] sm:$0xff]
    %v88 = vld [vmem:[%s1 + $0x10] sm:$0xff]
    %v89 = vld [vmem:[%s1 + $0x18] sm:$0xff]
    %v90 = vld [vmem:[%s1 + $0x20] sm:$0xff]
    %v91 = vld [vmem:[%s1 + $0x28] sm:$0xff]
    %v92 = vld [vmem:[%s1 + $0x30] sm:$0xff]
    %v93 = vld [vmem:[%s1 + $0x38] sm:$0xff]
    %v94 = vld [vmem:[%s3] sm:$0xff]
    %v95 = vld [vmem:[%s3 + $0x8] sm:$0xff]
    %v96 = vld [vmem:[%s3 + $0x10] sm:$0xff]
    %v97 = vld [vmem:[%s3 + $0x18] sm:$0xff]
    %v98 = vld [vmem:[%s3 + $0x20] sm:$0xff]
    %v99 = vld [vmem:[%s3 + $0x28] sm:$0xff]
    %v100 = vld [vmem:[%s3 + $0x30] sm:$0xff]
    %v101 = vld [vmem:[%s3 + $0x38] sm:$0xff]
    %s102 = sld [smem:[#allocation2]]
    %v103 = vlaneseq
    %v104 = vshrl.u32 %v103, 7
    %v105 = vadd.s32 %v104, 8
    %v106 = vadd.s32 %v104, 16
    %v107 = vadd.s32 %v104, 24
    %v108 = vadd.s32 %v104, 32
    %v109 = vadd.s32 %v104, 40
    %v110 = vadd.s32 %v104, 48
    %v111 = vadd.s32 %v104, 56
    %v112 = vld [vmem:[%s2] sm:$0x1]
    %v113 = vlaneseq
    %v114 = vshrl.u32 %v113, 7
    %v115 = vsub.s32 0, %v114
    %v116 = vrot.slane %v112, %v115
    %vm117 = vcmp.eq.s32.totalorder %v104, %v116
    %vm118 = vcmp.eq.s32.totalorder %v105, %v116
    %vm119 = vcmp.eq.s32.totalorder %v106, %v116
    %vm120 = vcmp.eq.s32.totalorder %v107, %v116
    %vm121 = vcmp.eq.s32.totalorder %v108, %v116
    %vm122 = vcmp.eq.s32.totalorder %v109, %v116
    %vm123 = vcmp.eq.s32.totalorder %v110, %v116
    %vm124 = vcmp.eq.s32.totalorder %v111, %v116
    %v125 = vsel %vm117, 1, 0
    %v126 = vsel %vm118, 1, 0
    %v127 = vsel %vm119, 1, 0
    %v128 = vsel %vm120, 1, 0
    %v129 = vsel %vm121, 1, 0
    %v130 = vsel %vm122, 1, 0
    %v131 = vsel %vm123, 1, 0
    %v132 = vsel %vm124, 1, 0
    %v133 = vcvt.s32.f32 %v125
    %v134 = vcvt.s32.f32 %v126
    %v135 = vcvt.s32.f32 %v127
    %v136 = vcvt.s32.f32 %v128
    %v137 = vcvt.s32.f32 %v129
    %v138 = vcvt.s32.f32 %v130
    %v139 = vcvt.s32.f32 %v131
    %v140 = vcvt.s32.f32 %v132
    %vm141 = vcmask 523264
    %v143 = vsel %vm141, %v133, 0
    %v146 = vsel %vm141, %v134, 0
    %v149 = vsel %vm141, %v135, 0
    %v152 = vsel %vm141, %v136, 0
    %v155 = vsel %vm141, %v137, 0
    %v158 = vsel %vm141, %v138, 0
    %v161 = vsel %vm141, %v139, 0
    %v164 = vsel %vm141, %v140, 0
    %166 = vmatprep.subr.mxu0 0.0
    %167 = vmatpush1.msra.mxu0 0.0
    %168 = vmatprep.subr.mxu0 0.0
    %169 = vmatpush1.msra.mxu0 0.0
    %170 = vmatprep.subr.mxu0 0.0
    %171 = vmatpush1.msra.mxu0 0.0
    %172 = vmatprep.subr.mxu0 0.0
    %173 = vmatpush1.msra.mxu0 0.0
    %174 = vmatprep.subr.mxu0 0.0
    %175 = vmatpush1.msra.mxu0 0.0
    %176 = vmatprep.subr.mxu0 0.0
    %177 = vmatpush1.msra.mxu0 0.0
    %178 = vmatprep.subr.mxu0 0.0
    %179 = vmatpush1.msra.mxu0 0.0
    %180 = vmatprep.subr.mxu0 0.0
    %181 = vmatpush1.msra.mxu0 0.0
    %182 = vmatprep.subr.mxu0 0.0
    %183 = vmatpush1.msra.mxu0 %v93
    %184 = vmatprep.subr.mxu0 0.0
    %185 = vmatpush1.msra.mxu0 %v92
    %186 = vmatprep.subr.mxu0 0.0
    %187 = vmatpush1.msra.mxu0 %v91
    %188 = vmatprep.subr.mxu0 0.0
    %189 = vmatpush1.msra.mxu0 %v90
    %190 = vmatprep.subr.mxu0 0.0
    %191 = vmatpush1.msra.mxu0 %v89
    %192 = vmatprep.subr.mxu0 0.0
    %193 = vmatpush1.msra.mxu0 %v88
    %194 = vmatprep.subr.mxu0 0.0
    %195 = vmatpush1.msra.mxu0 %v87
    %196 = vmatprep.subr.mxu0 0.0
    %197 = vmatpush1.msra.mxu0 %v86
    %198 = vmatprep.subr.mxu0 0.0
    %199 = vmatpush2.msra.mxu0 0.0
    %200 = vmatprep.subr.mxu0 0.0
    %201 = vmatpush2.msra.mxu0 0.0
    %202 = vmatprep.subr.mxu0 0.0
    %203 = vmatpush2.msra.mxu0 0.0
    %204 = vmatprep.subr.mxu0 0.0
    %205 = vmatpush2.msra.mxu0 0.0
    %206 = vmatprep.subr.mxu0 0.0
    %207 = vmatpush2.msra.mxu0 0.0
    %208 = vmatprep.subr.mxu0 0.0
    %209 = vmatpush2.msra.mxu0 0.0
    %210 = vmatprep.subr.mxu0 0.0
    %211 = vmatpush2.msra.mxu0 0.0
    %212 = vmatprep.subr.mxu0 0.0
    %213 = vmatpush2.msra.mxu0 0.0
    %214 = vmatprep.subr.mxu0 0.0
    %215 = vmatpush2.msra.mxu0 0.0
    %216 = vmatprep.subr.mxu0 0.0
    %217 = vmatpush2.msra.mxu0 0.0
    %218 = vmatprep.subr.mxu0 0.0
    %219 = vmatpush2.msra.mxu0 0.0
    %220 = vmatprep.subr.mxu0 0.0
    %221 = vmatpush2.msra.mxu0 0.0
    %222 = vmatprep.subr.mxu0 0.0
    %223 = vmatpush2.msra.mxu0 0.0
    %224 = vmatprep.subr.mxu0 0.0
    %225 = vmatpush2.msra.mxu0 0.0
    %226 = vmatprep.subr.mxu0 0.0
    %227 = vmatpush2.msra.mxu0 0.0
    %228 = vmatprep.subr.mxu0 0.0
    %229 = vmatpush2.msra.mxu0 0.0
    %230 = vmatprep.mubr.f32.mxu0 0.0
    %231 = vmatmul.mubr.f32.gmra.mxu0 %v143
    %v232 = vpop.f32.mrf.mxu0
    %v233 = vadd.f32 0.0, %v232
    %v234 = vpop.f32.mrf.mxu0
    %235 = vmatprep.mubr.f32.mxu0 0.0
    %236 = vmatmul.mubr.f32.gmra.mxu0 %v146
    %v237 = vpop.f32.mrf.mxu0
    %v238 = vadd.f32 0.0, %v237
    %v239 = vpop.f32.mrf.mxu0
    %240 = vmatprep.mubr.f32.mxu0 0.0
    %241 = vmatmul.mubr.f32.gmra.mxu0 %v149
    %v242 = vpop.f32.mrf.mxu0
    %v243 = vadd.f32 0.0, %v242
    %v244 = vpop.f32.mrf.mxu0
    %245 = vmatprep.mubr.f32.mxu0 0.0
    %246 = vmatmul.mubr.f32.gmra.mxu0 %v152
    %v247 = vpop.f32.mrf.mxu0
    %v248 = vadd.f32 0.0, %v247
    %v249 = vpop.f32.mrf.mxu0
    %250 = vmatprep.mubr.f32.mxu0 0.0
    %251 = vmatmul.mubr.f32.gmra.mxu0 %v155
    %v252 = vpop.f32.mrf.mxu0
    %v253 = vadd.f32 0.0, %v252
    %v254 = vpop.f32.mrf.mxu0
    %255 = vmatprep.mubr.f32.mxu0 0.0
    %256 = vmatmul.mubr.f32.gmra.mxu0 %v158
    %v257 = vpop.f32.mrf.mxu0
    %v258 = vadd.f32 0.0, %v257
    %v259 = vpop.f32.mrf.mxu0
    %260 = vmatprep.mubr.f32.mxu0 0.0
    %261 = vmatmul.mubr.f32.gmra.mxu0 %v161
    %v262 = vpop.f32.mrf.mxu0
    %v263 = vadd.f32 0.0, %v262
    %v264 = vpop.f32.mrf.mxu0
    %265 = vmatprep.mubr.f32.mxu0 0.0
    %266 = vmatmul.mubr.f32.gmra.mxu0 %v164
    %v267 = vpop.f32.mrf.mxu0
    %v268 = vadd.f32 0.0, %v267
    %v269 = vpop.f32.mrf.mxu0
    %270 = vdwg.mxu0
    %v271 = vsel %vm141, %v133, 0.0
    %272 = vadd.xlane.f32.xlu0 %v271
    %v273 = vpop.xlane.xlu0 %272
    %v274 = vsel %vm141, %v134, 0.0
    %275 = vadd.xlane.f32.xlu0 %v274
    %v276 = vpop.xlane.xlu0 %275
    %v277 = vsel %vm141, %v135, 0.0
    %278 = vadd.xlane.f32.xlu0 %v277
    %v279 = vpop.xlane.xlu0 %278
    %v280 = vsel %vm141, %v136, 0.0
    %281 = vadd.xlane.f32.xlu0 %v280
    %v282 = vpop.xlane.xlu0 %281
    %v283 = vsel %vm141, %v137, 0.0
    %284 = vadd.xlane.f32.xlu0 %v283
    %v285 = vpop.xlane.xlu0 %284
    %v286 = vsel %vm141, %v138, 0.0
    %287 = vadd.xlane.f32.xlu0 %v286
    %v288 = vpop.xlane.xlu0 %287
    %v289 = vsel %vm141, %v139, 0.0
    %290 = vadd.xlane.f32.xlu0 %v289
    %v291 = vpop.xlane.xlu0 %290
    %v292 = vsel %vm141, %v140, 0.0
    %293 = vadd.xlane.f32.xlu0 %v292
    %v294 = vpop.xlane.xlu0 %293
    %v295 = vmax.f32 %v273, 1.0
    %v296 = vmax.f32 %v276, 1.0
    %v297 = vmax.f32 %v279, 1.0
    %v298 = vmax.f32 %v282, 1.0
    %v299 = vmax.f32 %v285, 1.0
    %v300 = vmax.f32 %v288, 1.0
    %v301 = vmax.f32 %v291, 1.0
    %v302 = vmax.f32 %v294, 1.0
    %v303 = vrcp.pop %v295
    %v304 = vrcp.pop %v296
    %v305 = vrcp.pop %v297
    %v306 = vrcp.pop %v298
    %v307 = vrcp.pop %v299
    %v308 = vrcp.pop %v300
    %v309 = vrcp.pop %v301
    %v310 = vrcp.pop %v302
    %v311 = vmul.f32 %v233, %v303
    %v312 = vmul.f32 %v238, %v304
    %v313 = vmul.f32 %v243, %v305
    %v314 = vmul.f32 %v248, %v306
    %v315 = vmul.f32 %v253, %v307
    %v316 = vmul.f32 %v258, %v308
    %v317 = vmul.f32 %v263, %v309
    %v318 = vmul.f32 %v268, %v310
    %v319 = vstv %s102
    %v320 = vmul.f32 %v319, %v273
    %v321 = vmul.f32 %v319, %v276
    %v322 = vmul.f32 %v319, %v279
    %v323 = vmul.f32 %v319, %v282
    %v324 = vmul.f32 %v319, %v285
    %v325 = vmul.f32 %v319, %v288
    %v326 = vmul.f32 %v319, %v291
    %v327 = vmul.f32 %v319, %v294
    %v328 = vsub.f32 %v320, %v233
    %v329 = vsub.f32 %v321, %v238
    %v330 = vsub.f32 %v322, %v243
    %v331 = vsub.f32 %v323, %v248
    %v332 = vsub.f32 %v324, %v253
    %v333 = vsub.f32 %v325, %v258
    %v334 = vsub.f32 %v326, %v263
    %v335 = vsub.f32 %v327, %v268
    %v336 = vmul.f32 %v328, %v303
    %v337 = vmul.f32 %v329, %v304
    %v338 = vmul.f32 %v330, %v305
    %v339 = vmul.f32 %v331, %v306
    %v340 = vmul.f32 %v332, %v307
    %v341 = vmul.f32 %v333, %v308
    %v342 = vmul.f32 %v334, %v309
    %v343 = vmul.f32 %v335, %v310
    %v344 = vld [vmem:[%s6] sm:$0xff]
    %v345 = vld [vmem:[%s6 + $0x8] sm:$0xff]
    %v346 = vld [vmem:[%s6 + $0x10] sm:$0xff]
    %v347 = vld [vmem:[%s6 + $0x18] sm:$0xff]
    %v348 = vld [vmem:[%s6 + $0x20] sm:$0xff]
    %v349 = vld [vmem:[%s6 + $0x28] sm:$0xff]
    %v350 = vld [vmem:[%s6 + $0x30] sm:$0xff]
    %v351 = vld [vmem:[%s6 + $0x38] sm:$0xff]
    %v352 = vld [vmem:[%s6 + $0x40] sm:$0x1]
    %354 = vset.pattern.permute.xlu0 64
    %355 = vperm.xlu0 %354, %v336
    %v356 = vpop.permute.xlu0 %355
    %359 = vset.pattern.permute.xlu0 64
    %360 = vperm.xlu0 %359, %v337
    %v361 = vpop.permute.xlu0 %360
    %364 = vset.pattern.permute.xlu0 64
    %365 = vperm.xlu0 %364, %v338
    %v366 = vpop.permute.xlu0 %365
    %369 = vset.pattern.permute.xlu0 64
    %370 = vperm.xlu0 %369, %v339
    %v371 = vpop.permute.xlu0 %370
    %374 = vset.pattern.permute.xlu0 64
    %375 = vperm.xlu0 %374, %v340
    %v376 = vpop.permute.xlu0 %375
    %379 = vset.pattern.permute.xlu0 64
    %380 = vperm.xlu0 %379, %v341
    %v381 = vpop.permute.xlu0 %380
    %384 = vset.pattern.permute.xlu0 64
    %385 = vperm.xlu0 %384, %v342
    %v386 = vpop.permute.xlu0 %385
    %389 = vset.pattern.permute.xlu0 64
    %390 = vperm.xlu0 %389, %v343
    %v391 = vpop.permute.xlu0 %390
    %v393 = vlaneseq
    %v394 = vshrl.u32 %v393, 7
    %v395 = vsub.s32 0, %v394
    %v396 = vrot.slane %v352, %v395
    %v397 = vmul.f32 %v356, %v396
    %v398 = vmul.f32 %v361, %v396
    %v399 = vmul.f32 %v366, %v396
    %v400 = vmul.f32 %v371, %v396
    %v401 = vmul.f32 %v376, %v396
    %v402 = vmul.f32 %v381, %v396
    %v403 = vmul.f32 %v386, %v396
    %v404 = vmul.f32 %v391, %v396
    %v406 = vsel %vm141, %v311, 0
    %v409 = vsel %vm141, %v312, 0
    %v412 = vsel %vm141, %v313, 0
    %v415 = vsel %vm141, %v314, 0
    %v418 = vsel %vm141, %v315, 0
    %v421 = vsel %vm141, %v316, 0
    %v424 = vsel %vm141, %v317, 0
    %v427 = vsel %vm141, %v318, 0
    %429 = vmatprep.subr.mxu0 0.0
    %430 = vmatpush1.msra.mxu0 0.0
    %431 = vmatprep.subr.mxu0 0.0
    %432 = vmatpush1.msra.mxu0 0.0
    %433 = vmatprep.subr.mxu0 0.0
    %434 = vmatpush1.msra.mxu0 0.0
    %435 = vmatprep.subr.mxu0 0.0
    %436 = vmatpush1.msra.mxu0 0.0
    %437 = vmatprep.subr.mxu0 0.0
    %438 = vmatpush1.msra.mxu0 0.0
    %439 = vmatprep.subr.mxu0 0.0
    %440 = vmatpush1.msra.mxu0 0.0
    %441 = vmatprep.subr.mxu0 0.0
    %442 = vmatpush1.msra.mxu0 0.0
    %443 = vmatprep.subr.mxu0 0.0
    %444 = vmatpush1.msra.mxu0 0.0
    %445 = vmatprep.subr.mxu0 0.0
    %446 = vmatpush1.msra.mxu0 %v351
    %447 = vmatprep.subr.mxu0 0.0
    %448 = vmatpush1.msra.mxu0 %v350
    %449 = vmatprep.subr.mxu0 0.0
    %450 = vmatpush1.msra.mxu0 %v349
    %451 = vmatprep.subr.mxu0 0.0
    %452 = vmatpush1.msra.mxu0 %v348
    %453 = vmatprep.subr.mxu0 0.0
    %454 = vmatpush1.msra.mxu0 %v347
    %455 = vmatprep.subr.mxu0 0.0
    %456 = vmatpush1.msra.mxu0 %v346
    %457 = vmatprep.subr.mxu0 0.0
    %458 = vmatpush1.msra.mxu0 %v345
    %459 = vmatprep.subr.mxu0 0.0
    %460 = vmatpush1.msra.mxu0 %v344
    %461 = vmatprep.subr.mxu0 0.0
    %462 = vmatpush2.msra.mxu0 0.0
    %463 = vmatprep.subr.mxu0 0.0
    %464 = vmatpush2.msra.mxu0 0.0
    %465 = vmatprep.subr.mxu0 0.0
    %466 = vmatpush2.msra.mxu0 0.0
    %467 = vmatprep.subr.mxu0 0.0
    %468 = vmatpush2.msra.mxu0 0.0
    %469 = vmatprep.subr.mxu0 0.0
    %470 = vmatpush2.msra.mxu0 0.0
    %471 = vmatprep.subr.mxu0 0.0
    %472 = vmatpush2.msra.mxu0 0.0
    %473 = vmatprep.subr.mxu0 0.0
    %474 = vmatpush2.msra.mxu0 0.0
    %475 = vmatprep.subr.mxu0 0.0
    %476 = vmatpush2.msra.mxu0 0.0
    %477 = vmatprep.subr.mxu0 0.0
    %478 = vmatpush2.msra.mxu0 0.0
    %479 = vmatprep.subr.mxu0 0.0
    %480 = vmatpush2.msra.mxu0 0.0
    %481 = vmatprep.subr.mxu0 0.0
    %482 = vmatpush2.msra.mxu0 0.0
    %483 = vmatprep.subr.mxu0 0.0
    %484 = vmatpush2.msra.mxu0 0.0
    %485 = vmatprep.subr.mxu0 0.0
    %486 = vmatpush2.msra.mxu0 0.0
    %487 = vmatprep.subr.mxu0 0.0
    %488 = vmatpush2.msra.mxu0 0.0
    %489 = vmatprep.subr.mxu0 0.0
    %490 = vmatpush2.msra.mxu0 0.0
    %491 = vmatprep.subr.mxu0 0.0
    %492 = vmatpush2.msra.mxu0 0.0
    %493 = vmatprep.mubr.f32.mxu0 0.0
    %494 = vmatmul.mubr.f32.gmra.mxu0 %v406
    %v495 = vpop.f32.mrf.mxu0
    %v496 = vadd.f32 %v397, %v495
    %v497 = vpop.f32.mrf.mxu0
    %498 = vmatprep.mubr.f32.mxu0 0.0
    %499 = vmatmul.mubr.f32.gmra.mxu0 %v409
    %v500 = vpop.f32.mrf.mxu0
    %v501 = vadd.f32 %v398, %v500
    %v502 = vpop.f32.mrf.mxu0
    %503 = vmatprep.mubr.f32.mxu0 0.0
    %504 = vmatmul.mubr.f32.gmra.mxu0 %v412
    %v505 = vpop.f32.mrf.mxu0
    %v506 = vadd.f32 %v399, %v505
    %v507 = vpop.f32.mrf.mxu0
    %508 = vmatprep.mubr.f32.mxu0 0.0
    %509 = vmatmul.mubr.f32.gmra.mxu0 %v415
    %v510 = vpop.f32.mrf.mxu0
    %v511 = vadd.f32 %v400, %v510
    %v512 = vpop.f32.mrf.mxu0
    %513 = vmatprep.mubr.f32.mxu0 0.0
    %514 = vmatmul.mubr.f32.gmra.mxu0 %v418
    %v515 = vpop.f32.mrf.mxu0
    %v516 = vadd.f32 %v401, %v515
    %v517 = vpop.f32.mrf.mxu0
    %518 = vmatprep.mubr.f32.mxu0 0.0
    %519 = vmatmul.mubr.f32.gmra.mxu0 %v421
    %v520 = vpop.f32.mrf.mxu0
    %v521 = vadd.f32 %v402, %v520
    %v522 = vpop.f32.mrf.mxu0
    %523 = vmatprep.mubr.f32.mxu0 0.0
    %524 = vmatmul.mubr.f32.gmra.mxu0 %v424
    %v525 = vpop.f32.mrf.mxu0
    %v526 = vadd.f32 %v403, %v525
    %v527 = vpop.f32.mrf.mxu0
    %528 = vmatprep.mubr.f32.mxu0 0.0
    %529 = vmatmul.mubr.f32.gmra.mxu0 %v427
    %v530 = vpop.f32.mrf.mxu0
    %v531 = vadd.f32 %v404, %v530
    %v532 = vpop.f32.mrf.mxu0
    %533 = vdwg.mxu0
    %v534 = vld [vmem:[%s8] sm:$0x1]
    %v536 = vlaneseq
    %v537 = vshrl.u32 %v536, 7
    %v538 = vsub.s32 0, %v537
    %v539 = vrot.slane %v534, %v538
    %v541 = vadd.f32 %v496, %v539
    %v542 = vadd.f32 %v501, %v539
    %v543 = vadd.f32 %v506, %v539
    %v544 = vadd.f32 %v511, %v539
    %v545 = vadd.f32 %v516, %v539
    %v546 = vadd.f32 %v521, %v539
    %v547 = vadd.f32 %v526, %v539
    %v548 = vadd.f32 %v531, %v539
    %v549 = vld [vmem:[%s7] sm:$0xff]
    %v550 = vld [vmem:[%s7 + $0x8] sm:$0xff]
    %v551 = vld [vmem:[%s7 + $0x10] sm:$0xff]
    %v552 = vld [vmem:[%s7 + $0x18] sm:$0xff]
    %vm553 = vcmask 261120
    %v555 = vsel %vm553, %v94, 0
    %v558 = vsel %vm553, %v95, 0
    %v561 = vsel %vm553, %v96, 0
    %v564 = vsel %vm553, %v97, 0
    %v567 = vsel %vm553, %v98, 0
    %v570 = vsel %vm553, %v99, 0
    %v573 = vsel %vm553, %v100, 0
    %v576 = vsel %vm553, %v101, 0
    %578 = vmatprep.subr.mxu0 0.0
    %579 = vmatpush1.msra.mxu0 0.0
    %580 = vmatprep.subr.mxu0 0.0
    %581 = vmatpush1.msra.mxu0 0.0
    %582 = vmatprep.subr.mxu0 0.0
    %583 = vmatpush1.msra.mxu0 0.0
    %584 = vmatprep.subr.mxu0 0.0
    %585 = vmatpush1.msra.mxu0 0.0
    %586 = vmatprep.subr.mxu0 0.0
    %587 = vmatpush1.msra.mxu0 0.0
    %588 = vmatprep.subr.mxu0 0.0
    %589 = vmatpush1.msra.mxu0 0.0
    %590 = vmatprep.subr.mxu0 0.0
    %591 = vmatpush1.msra.mxu0 0.0
    %592 = vmatprep.subr.mxu0 0.0
    %593 = vmatpush1.msra.mxu0 0.0
    %594 = vmatprep.subr.mxu0 0.0
    %595 = vmatpush1.msra.mxu0 0.0
    %596 = vmatprep.subr.mxu0 0.0
    %597 = vmatpush1.msra.mxu0 0.0
    %598 = vmatprep.subr.mxu0 0.0
    %599 = vmatpush1.msra.mxu0 0.0
    %600 = vmatprep.subr.mxu0 0.0
    %601 = vmatpush1.msra.mxu0 0.0
    %602 = vmatprep.subr.mxu0 0.0
    %603 = vmatpush1.msra.mxu0 %v552
    %604 = vmatprep.subr.mxu0 0.0
    %605 = vmatpush1.msra.mxu0 %v551
    %606 = vmatprep.subr.mxu0 0.0
    %607 = vmatpush1.msra.mxu0 %v550
    %608 = vmatprep.subr.mxu0 0.0
    %609 = vmatpush1.msra.mxu0 %v549
    %610 = vmatprep.subr.mxu0 0.0
    %611 = vmatpush2.msra.mxu0 0.0
    %612 = vmatprep.subr.mxu0 0.0
    %613 = vmatpush2.msra.mxu0 0.0
    %614 = vmatprep.subr.mxu0 0.0
    %615 = vmatpush2.msra.mxu0 0.0
    %616 = vmatprep.subr.mxu0 0.0
    %617 = vmatpush2.msra.mxu0 0.0
    %618 = vmatprep.subr.mxu0 0.0
    %619 = vmatpush2.msra.mxu0 0.0
    %620 = vmatprep.subr.mxu0 0.0
    %621 = vmatpush2.msra.mxu0 0.0
    %622 = vmatprep.subr.mxu0 0.0
    %623 = vmatpush2.msra.mxu0 0.0
    %624 = vmatprep.subr.mxu0 0.0
    %625 = vmatpush2.msra.mxu0 0.0
    %626 = vmatprep.subr.mxu0 0.0
    %627 = vmatpush2.msra.mxu0 0.0
    %628 = vmatprep.subr.mxu0 0.0
    %629 = vmatpush2.msra.mxu0 0.0
    %630 = vmatprep.subr.mxu0 0.0
    %631 = vmatpush2.msra.mxu0 0.0
    %632 = vmatprep.subr.mxu0 0.0
    %633 = vmatpush2.msra.mxu0 0.0
    %634 = vmatprep.subr.mxu0 0.0
    %635 = vmatpush2.msra.mxu0 0.0
    %636 = vmatprep.subr.mxu0 0.0
    %637 = vmatpush2.msra.mxu0 0.0
    %638 = vmatprep.subr.mxu0 0.0
    %639 = vmatpush2.msra.mxu0 0.0
    %640 = vmatprep.subr.mxu0 0.0
    %641 = vmatpush2.msra.mxu0 0.0
    %642 = vmatprep.mubr.f32.mxu0 0.0
    %643 = vmatmul.mubr.f32.gmra.mxu0 %v555
    %v644 = vpop.f32.mrf.mxu0
    %v645 = vadd.f32 0.0, %v644
    %v646 = vpop.f32.mrf.mxu0
    %647 = vmatprep.mubr.f32.mxu0 0.0
    %648 = vmatmul.mubr.f32.gmra.mxu0 %v558
    %v649 = vpop.f32.mrf.mxu0
    %v650 = vadd.f32 0.0, %v649
    %v651 = vpop.f32.mrf.mxu0
    %652 = vmatprep.mubr.f32.mxu0 0.0
    %653 = vmatmul.mubr.f32.gmra.mxu0 %v561
    %v654 = vpop.f32.mrf.mxu0
    %v655 = vadd.f32 0.0, %v654
    %v656 = vpop.f32.mrf.mxu0
    %657 = vmatprep.mubr.f32.mxu0 0.0
    %658 = vmatmul.mubr.f32.gmra.mxu0 %v564
    %v659 = vpop.f32.mrf.mxu0
    %v660 = vadd.f32 0.0, %v659
    %v661 = vpop.f32.mrf.mxu0
    %662 = vmatprep.mubr.f32.mxu0 0.0
    %663 = vmatmul.mubr.f32.gmra.mxu0 %v567
    %v664 = vpop.f32.mrf.mxu0
    %v665 = vadd.f32 0.0, %v664
    %v666 = vpop.f32.mrf.mxu0
    %667 = vmatprep.mubr.f32.mxu0 0.0
    %668 = vmatmul.mubr.f32.gmra.mxu0 %v570
    %v669 = vpop.f32.mrf.mxu0
    %v670 = vadd.f32 0.0, %v669
    %v671 = vpop.f32.mrf.mxu0
    %672 = vmatprep.mubr.f32.mxu0 0.0
    %673 = vmatmul.mubr.f32.gmra.mxu0 %v573
    %v674 = vpop.f32.mrf.mxu0
    %v675 = vadd.f32 0.0, %v674
    %v676 = vpop.f32.mrf.mxu0
    %677 = vmatprep.mubr.f32.mxu0 0.0
    %678 = vmatmul.mubr.f32.gmra.mxu0 %v576
    %v679 = vpop.f32.mrf.mxu0
    %v680 = vadd.f32 0.0, %v679
    %v681 = vpop.f32.mrf.mxu0
    %682 = vdwg.mxu0
    %v683 = vadd.f32 %v541, %v645
    %v684 = vadd.f32 %v542, %v650
    %v685 = vadd.f32 %v543, %v655
    %v686 = vadd.f32 %v544, %v660
    %v687 = vadd.f32 %v545, %v665
    %v688 = vadd.f32 %v546, %v670
    %v689 = vadd.f32 %v547, %v675
    %v690 = vadd.f32 %v548, %v680
    %v691 = vxor.u32 %v683, 2147483648
    %v692 = vxor.u32 %v684, 2147483648
    %v693 = vxor.u32 %v685, 2147483648
    %v694 = vxor.u32 %v686, 2147483648
    %v695 = vxor.u32 %v687, 2147483648
    %v696 = vxor.u32 %v688, 2147483648
    %v697 = vxor.u32 %v689, 2147483648
    %v698 = vxor.u32 %v690, 2147483648
    %v699 = vmul.f32 %v691, 1.442695
    %v700 = vpow.pop %v699
    %v701 = vmul.f32 %v692, 1.442695
    %v702 = vpow.pop %v701
    %v703 = vmul.f32 %v693, 1.442695
    %v704 = vpow.pop %v703
    %v705 = vmul.f32 %v694, 1.442695
    %v706 = vpow.pop %v705
    %v707 = vmul.f32 %v695, 1.442695
    %v708 = vpow.pop %v707
    %v709 = vmul.f32 %v696, 1.442695
    %v710 = vpow.pop %v709
    %v711 = vmul.f32 %v697, 1.442695
    %v712 = vpow.pop %v711
    %v713 = vmul.f32 %v698, 1.442695
    %v714 = vpow.pop %v713
    %v715 = vadd.f32 %v700, 1.0
    %v716 = vadd.f32 %v702, 1.0
    %v717 = vadd.f32 %v704, 1.0
    %v718 = vadd.f32 %v706, 1.0
    %v719 = vadd.f32 %v708, 1.0
    %v720 = vadd.f32 %v710, 1.0
    %v721 = vadd.f32 %v712, 1.0
    %v722 = vadd.f32 %v714, 1.0
    %v723 = vrcp.pop %v715
    %v724 = vmul.f32 1.0, %v723
    %v725 = vrcp.pop %v716
    %v726 = vmul.f32 1.0, %v725
    %v727 = vrcp.pop %v717
    %v728 = vmul.f32 1.0, %v727
    %v729 = vrcp.pop %v718
    %v730 = vmul.f32 1.0, %v729
    %v731 = vrcp.pop %v719
    %v732 = vmul.f32 1.0, %v731
    %v733 = vrcp.pop %v720
    %v734 = vmul.f32 1.0, %v733
    %v735 = vrcp.pop %v721
    %v736 = vmul.f32 1.0, %v735
    %v737 = vrcp.pop %v722
    %v738 = vmul.f32 1.0, %v737
    %747 = vrot.lane.b32.xlu0 %v645, 96
    %v748 = vpop.permute.xlu0 %747
    %749 = vrot.lane.b32.xlu0 %v650, 96
    %v750 = vpop.permute.xlu0 %749
    %751 = vrot.lane.b32.xlu0 %v655, 96
    %v752 = vpop.permute.xlu0 %751
    %753 = vrot.lane.b32.xlu0 %v660, 96
    %v754 = vpop.permute.xlu0 %753
    %755 = vrot.lane.b32.xlu0 %v665, 96
    %v756 = vpop.permute.xlu0 %755
    %757 = vrot.lane.b32.xlu0 %v670, 96
    %v758 = vpop.permute.xlu0 %757
    %759 = vrot.lane.b32.xlu0 %v675, 96
    %v760 = vpop.permute.xlu0 %759
    %761 = vrot.lane.b32.xlu0 %v680, 96
    %v762 = vpop.permute.xlu0 %761
    %v771 = vmul.f32 %v724, %v748
    %v772 = vmul.f32 %v726, %v750
    %v773 = vmul.f32 %v728, %v752
    %v774 = vmul.f32 %v730, %v754
    %v775 = vmul.f32 %v732, %v756
    %v776 = vmul.f32 %v734, %v758
    %v777 = vmul.f32 %v736, %v760
    %v778 = vmul.f32 %v738, %v762
    %787 = vrot.lane.b32.xlu0 %v771, 32
    %v788 = vpop.permute.xlu0 %787
    %789 = vrot.lane.b32.xlu0 %v772, 32
    %v790 = vpop.permute.xlu0 %789
    %791 = vrot.lane.b32.xlu0 %v773, 32
    %v792 = vpop.permute.xlu0 %791
    %793 = vrot.lane.b32.xlu0 %v774, 32
    %v794 = vpop.permute.xlu0 %793
    %795 = vrot.lane.b32.xlu0 %v775, 32
    %v796 = vpop.permute.xlu0 %795
    %797 = vrot.lane.b32.xlu0 %v776, 32
    %v798 = vpop.permute.xlu0 %797
    %799 = vrot.lane.b32.xlu0 %v777, 32
    %v800 = vpop.permute.xlu0 %799
    %801 = vrot.lane.b32.xlu0 %v778, 32
    %v802 = vpop.permute.xlu0 %801
    %v811 = vadd.f32 %v541, %v788
    %v812 = vadd.f32 %v542, %v790
    %v813 = vadd.f32 %v543, %v792
    %v814 = vadd.f32 %v544, %v794
    %v815 = vadd.f32 %v545, %v796
    %v816 = vadd.f32 %v546, %v798
    %v817 = vadd.f32 %v547, %v800
    %v818 = vadd.f32 %v548, %v802
    %v819 = vtanh.pop %v811
    %v820 = vtanh.pop %v812
    %v821 = vtanh.pop %v813
    %v822 = vtanh.pop %v814
    %v823 = vtanh.pop %v815
    %v824 = vtanh.pop %v816
    %v825 = vtanh.pop %v817
    %v826 = vtanh.pop %v818
    %v827 = vsub.f32 1.0, %v724
    %v828 = vsub.f32 1.0, %v726
    %v829 = vsub.f32 1.0, %v728
    %v830 = vsub.f32 1.0, %v730
    %v831 = vsub.f32 1.0, %v732
    %v832 = vsub.f32 1.0, %v734
    %v833 = vsub.f32 1.0, %v736
    %v834 = vsub.f32 1.0, %v738
    %843 = vrot.lane.b32.xlu0 %v819, 64
    %v844 = vpop.permute.xlu0 %843
    %845 = vrot.lane.b32.xlu0 %v820, 64
    %v846 = vpop.permute.xlu0 %845
    %847 = vrot.lane.b32.xlu0 %v821, 64
    %v848 = vpop.permute.xlu0 %847
    %849 = vrot.lane.b32.xlu0 %v822, 64
    %v850 = vpop.permute.xlu0 %849
    %851 = vrot.lane.b32.xlu0 %v823, 64
    %v852 = vpop.permute.xlu0 %851
    %853 = vrot.lane.b32.xlu0 %v824, 64
    %v854 = vpop.permute.xlu0 %853
    %855 = vrot.lane.b32.xlu0 %v825, 64
    %v856 = vpop.permute.xlu0 %855
    %857 = vrot.lane.b32.xlu0 %v826, 64
    %v858 = vpop.permute.xlu0 %857
    %v867 = vmul.f32 %v827, %v844
    %v868 = vmul.f32 %v828, %v846
    %v869 = vmul.f32 %v829, %v848
    %v870 = vmul.f32 %v830, %v850
    %v871 = vmul.f32 %v831, %v852
    %v872 = vmul.f32 %v832, %v854
    %v873 = vmul.f32 %v833, %v856
    %v874 = vmul.f32 %v834, %v858
    %v875 = vmul.f32 %v724, %v94
    %v876 = vmul.f32 %v726, %v95
    %v877 = vmul.f32 %v728, %v96
    %v878 = vmul.f32 %v730, %v97
    %v879 = vmul.f32 %v732, %v98
    %v880 = vmul.f32 %v734, %v99
    %v881 = vmul.f32 %v736, %v100
    %v882 = vmul.f32 %v738, %v101
    %v883 = vadd.f32 %v867, %v875
    %v884 = vadd.f32 %v868, %v876
    %v885 = vadd.f32 %v869, %v877
    %v886 = vadd.f32 %v870, %v878
    %v887 = vadd.f32 %v871, %v879
    %v888 = vadd.f32 %v872, %v880
    %v889 = vadd.f32 %v873, %v881
    %v890 = vadd.f32 %v874, %v882
    %891 = vst.msk [vmem:[%s16] sm:$0xff] %vm553, %v883
    %892 = vst.msk [vmem:[%s16 + $0x8] sm:$0xff] %vm553, %v884
    %893 = vst.msk [vmem:[%s16 + $0x10] sm:$0xff] %vm553, %v885
    %894 = vst.msk [vmem:[%s16 + $0x18] sm:$0xff] %vm553, %v886
    %895 = vst.msk [vmem:[%s16 + $0x20] sm:$0xff] %vm553, %v887
    %896 = vst.msk [vmem:[%s16 + $0x28] sm:$0xff] %vm553, %v888
    %897 = vst.msk [vmem:[%s16 + $0x30] sm:$0xff] %vm553, %v889
    %898 = vst.msk [vmem:[%s16 + $0x38] sm:$0xff] %vm553, %v890
    %v899 = vld [vmem:[#allocation4] sm:$0xff]
    %v900 = vld [vmem:[#allocation4 + $0x8] sm:$0xff]
    %v901 = vunpack.c.l.s8.bf16 %v899
    %v902 = vunpack.c.h.s8.bf16 %v899
    %v903 = vunpack.c.l.s8.bf16 %v900
    %v904 = vunpack.c.h.s8.bf16 %v900
    %v905 = vpack.c.bf16 %v884, %v883
    %v906 = vpack.c.bf16 %v886, %v885
    %v907 = vpack.c.bf16 %v888, %v887
    %v908 = vpack.c.bf16 %v890, %v889
    %v910 = vsel %vm141, %v901, 0
    %v913 = vsel %vm141, %v902, 0
    %v916 = vsel %vm141, %v903, 0
    %v919 = vsel %vm141, %v904, 0
    %921 = vmatprep.subr.bf16.mxu0 0
    %922 = vmatpush1.bf16.msra.mxu0 0
    %923 = vmatprep.subr.bf16.mxu0 0
    %924 = vmatpush1.bf16.msra.mxu0 0
    %925 = vmatprep.subr.bf16.mxu0 0
    %926 = vmatpush1.bf16.msra.mxu0 0
    %927 = vmatprep.subr.bf16.mxu0 0
    %928 = vmatpush1.bf16.msra.mxu0 0
    %929 = vmatprep.subr.bf16.mxu0 0
    %930 = vmatpush1.bf16.msra.mxu0 %v908
    %931 = vmatprep.subr.bf16.mxu0 0
    %932 = vmatpush1.bf16.msra.mxu0 %v907
    %933 = vmatprep.subr.bf16.mxu0 0
    %934 = vmatpush1.bf16.msra.mxu0 %v906
    %935 = vmatprep.subr.bf16.mxu0 0
    %936 = vmatpush1.bf16.msra.mxu0 %v905
    %937 = vmatprep.subr.bf16.mxu0 0
    %938 = vmatpush2.bf16.msra.mxu0 0
    %939 = vmatprep.subr.bf16.mxu0 0
    %940 = vmatpush2.bf16.msra.mxu0 0
    %941 = vmatprep.subr.bf16.mxu0 0
    %942 = vmatpush2.bf16.msra.mxu0 0
    %943 = vmatprep.subr.bf16.mxu0 0
    %944 = vmatpush2.bf16.msra.mxu0 0
    %945 = vmatprep.subr.bf16.mxu0 0
    %946 = vmatpush2.bf16.msra.mxu0 0
    %947 = vmatprep.subr.bf16.mxu0 0
    %948 = vmatpush2.bf16.msra.mxu0 0
    %949 = vmatprep.subr.bf16.mxu0 0
    %950 = vmatpush2.bf16.msra.mxu0 0
    %951 = vmatprep.subr.bf16.mxu0 0
    %952 = vmatpush2.bf16.msra.mxu0 0
    %953 = vmatprep.mubr.bf16.mxu0 0
    %954 = vmatmul.mubr.bf16.gmra.mxu0 %v910
    %v955 = vpop.f32.mrf.mxu0
    %v956 = vadd.f32 0.0, %v955
    %v957 = vpop.f32.mrf.mxu0
    %v958 = vpop.f32.mrf.mxu0
    %v959 = vadd.f32 0.0, %v958
    %v960 = vpop.f32.mrf.mxu0
    %961 = vmatprep.mubr.bf16.mxu0 0
    %962 = vmatmul.mubr.bf16.gmra.mxu0 %v913
    %v963 = vpop.f32.mrf.mxu0
    %v964 = vadd.f32 0.0, %v963
    %v965 = vpop.f32.mrf.mxu0
    %v966 = vpop.f32.mrf.mxu0
    %v967 = vadd.f32 0.0, %v966
    %v968 = vpop.f32.mrf.mxu0
    %969 = vmatprep.mubr.bf16.mxu0 0
    %970 = vmatmul.mubr.bf16.gmra.mxu0 %v916
    %v971 = vpop.f32.mrf.mxu0
    %v972 = vadd.f32 0.0, %v971
    %v973 = vpop.f32.mrf.mxu0
    %v974 = vpop.f32.mrf.mxu0
    %v975 = vadd.f32 0.0, %v974
    %v976 = vpop.f32.mrf.mxu0
    %977 = vmatprep.mubr.bf16.mxu0 0
    %978 = vmatmul.mubr.bf16.gmra.mxu0 %v919
    %v979 = vpop.f32.mrf.mxu0
    %v980 = vadd.f32 0.0, %v979
    %v981 = vpop.f32.mrf.mxu0
    %v982 = vpop.f32.mrf.mxu0
    %v983 = vadd.f32 0.0, %v982
    %v984 = vpop.f32.mrf.mxu0
    %985 = vdwg.mxu0
    %v986 = vld [vmem:[%s9] sm:$0xff]
    %v987 = vld [vmem:[%s9 + $0x8] sm:$0xff]
    %v988 = vld [vmem:[%s9 + $0x10] sm:$0xff]
    %v989 = vld [vmem:[%s9 + $0x18] sm:$0xff]
    %v990 = vld [vmem:[%s10] sm:$0xff]
    %v991 = vld [vmem:[%s10 + $0x8] sm:$0xff]
    %v992 = vld [vmem:[%s10 + $0x10] sm:$0xff]
    %v993 = vld [vmem:[%s10 + $0x18] sm:$0xff]
    %v995 = vsel %vm553, %v956, 0
    %v998 = vsel %vm553, %v959, 0
    %v1001 = vsel %vm553, %v964, 0
    %v1004 = vsel %vm553, %v967, 0
    %v1007 = vsel %vm553, %v972, 0
    %v1010 = vsel %vm553, %v975, 0
    %v1013 = vsel %vm553, %v980, 0
    %v1016 = vsel %vm553, %v983, 0
    %1018 = vmatprep.subr.mxu0 0.0
    %1019 = vmatpush1.msra.mxu0 0.0
    %1020 = vmatprep.subr.mxu0 0.0
    %1021 = vmatpush1.msra.mxu0 0.0
    %1022 = vmatprep.subr.mxu0 0.0
    %1023 = vmatpush1.msra.mxu0 0.0
    %1024 = vmatprep.subr.mxu0 0.0
    %1025 = vmatpush1.msra.mxu0 0.0
    %1026 = vmatprep.subr.mxu0 0.0
    %1027 = vmatpush1.msra.mxu0 0.0
    %1028 = vmatprep.subr.mxu0 0.0
    %1029 = vmatpush1.msra.mxu0 0.0
    %1030 = vmatprep.subr.mxu0 0.0
    %1031 = vmatpush1.msra.mxu0 0.0
    %1032 = vmatprep.subr.mxu0 0.0
    %1033 = vmatpush1.msra.mxu0 0.0
    %1034 = vmatprep.subr.mxu0 0.0
    %1035 = vmatpush1.msra.mxu0 0.0
    %1036 = vmatprep.subr.mxu0 0.0
    %1037 = vmatpush1.msra.mxu0 0.0
    %1038 = vmatprep.subr.mxu0 0.0
    %1039 = vmatpush1.msra.mxu0 0.0
    %1040 = vmatprep.subr.mxu0 0.0
    %1041 = vmatpush1.msra.mxu0 0.0
    %1042 = vmatprep.subr.mxu0 0.0
    %1043 = vmatpush1.msra.mxu0 %v993
    %1044 = vmatprep.subr.mxu0 0.0
    %1045 = vmatpush1.msra.mxu0 %v992
    %1046 = vmatprep.subr.mxu0 0.0
    %1047 = vmatpush1.msra.mxu0 %v991
    %1048 = vmatprep.subr.mxu0 0.0
    %1049 = vmatpush1.msra.mxu0 %v990
    %1050 = vmatprep.subr.mxu0 0.0
    %1051 = vmatpush2.msra.mxu0 0.0
    %1052 = vmatprep.subr.mxu0 0.0
    %1053 = vmatpush2.msra.mxu0 0.0
    %1054 = vmatprep.subr.mxu0 0.0
    %1055 = vmatpush2.msra.mxu0 0.0
    %1056 = vmatprep.subr.mxu0 0.0
    %1057 = vmatpush2.msra.mxu0 0.0
    %1058 = vmatprep.subr.mxu0 0.0
    %1059 = vmatpush2.msra.mxu0 0.0
    %1060 = vmatprep.subr.mxu0 0.0
    %1061 = vmatpush2.msra.mxu0 0.0
    %1062 = vmatprep.subr.mxu0 0.0
    %1063 = vmatpush2.msra.mxu0 0.0
    %1064 = vmatprep.subr.mxu0 0.0
    %1065 = vmatpush2.msra.mxu0 0.0
    %1066 = vmatprep.subr.mxu0 0.0
    %1067 = vmatpush2.msra.mxu0 0.0
    %1068 = vmatprep.subr.mxu0 0.0
    %1069 = vmatpush2.msra.mxu0 0.0
    %1070 = vmatprep.subr.mxu0 0.0
    %1071 = vmatpush2.msra.mxu0 0.0
    %1072 = vmatprep.subr.mxu0 0.0
    %1073 = vmatpush2.msra.mxu0 0.0
    %1074 = vmatprep.subr.mxu0 0.0
    %1075 = vmatpush2.msra.mxu0 0.0
    %1076 = vmatprep.subr.mxu0 0.0
    %1077 = vmatpush2.msra.mxu0 0.0
    %1078 = vmatprep.subr.mxu0 0.0
    %1079 = vmatpush2.msra.mxu0 0.0
    %1080 = vmatprep.subr.mxu0 0.0
    %1081 = vmatpush2.msra.mxu0 0.0
    %1082 = vmatprep.mubr.f32.mxu0 0.0
    %1083 = vmatmul.mubr.f32.gmra.mxu0 %v995
    %v1084 = vpop.f32.mrf.mxu0
    %v1085 = vadd.f32 0.0, %v1084
    %v1086 = vpop.f32.mrf.mxu0
    %1087 = vmatprep.mubr.f32.mxu0 0.0
    %1088 = vmatmul.mubr.f32.gmra.mxu0 %v998
    %v1089 = vpop.f32.mrf.mxu0
    %v1090 = vadd.f32 0.0, %v1089
    %v1091 = vpop.f32.mrf.mxu0
    %1092 = vmatprep.mubr.f32.mxu0 0.0
    %1093 = vmatmul.mubr.f32.gmra.mxu0 %v1001
    %v1094 = vpop.f32.mrf.mxu0
    %v1095 = vadd.f32 0.0, %v1094
    %v1096 = vpop.f32.mrf.mxu0
    %1097 = vmatprep.mubr.f32.mxu0 0.0
    %1098 = vmatmul.mubr.f32.gmra.mxu0 %v1004
    %v1099 = vpop.f32.mrf.mxu0
    %v1100 = vadd.f32 0.0, %v1099
    %v1101 = vpop.f32.mrf.mxu0
    %1102 = vmatprep.mubr.f32.mxu0 0.0
    %1103 = vmatmul.mubr.f32.gmra.mxu0 %v1007
    %v1104 = vpop.f32.mrf.mxu0
    %v1105 = vadd.f32 0.0, %v1104
    %v1106 = vpop.f32.mrf.mxu0
    %1107 = vmatprep.mubr.f32.mxu0 0.0
    %1108 = vmatmul.mubr.f32.gmra.mxu0 %v1010
    %v1109 = vpop.f32.mrf.mxu0
    %v1110 = vadd.f32 0.0, %v1109
    %v1111 = vpop.f32.mrf.mxu0
    %1112 = vmatprep.mubr.f32.mxu0 0.0
    %1113 = vmatmul.mubr.f32.gmra.mxu0 %v1013
    %v1114 = vpop.f32.mrf.mxu0
    %v1115 = vadd.f32 0.0, %v1114
    %v1116 = vpop.f32.mrf.mxu0
    %1117 = vmatprep.mubr.f32.mxu0 0.0
    %1118 = vmatmul.mubr.f32.gmra.mxu0 %v1016
    %v1119 = vpop.f32.mrf.mxu0
    %v1120 = vadd.f32 0.0, %v1119
    %v1121 = vpop.f32.mrf.mxu0
    %1122 = vdwg.mxu0
    %v1124 = vsel %vm553, %v883, 0
    %v1127 = vsel %vm553, %v884, 0
    %v1130 = vsel %vm553, %v885, 0
    %v1133 = vsel %vm553, %v886, 0
    %v1136 = vsel %vm553, %v887, 0
    %v1139 = vsel %vm553, %v888, 0
    %v1142 = vsel %vm553, %v889, 0
    %v1145 = vsel %vm553, %v890, 0
    %1147 = vmatprep.subr.mxu0 0.0
    %1148 = vmatpush1.msra.mxu0 0.0
    %1149 = vmatprep.subr.mxu0 0.0
    %1150 = vmatpush1.msra.mxu0 0.0
    %1151 = vmatprep.subr.mxu0 0.0
    %1152 = vmatpush1.msra.mxu0 0.0
    %1153 = vmatprep.subr.mxu0 0.0
    %1154 = vmatpush1.msra.mxu0 0.0
    %1155 = vmatprep.subr.mxu0 0.0
    %1156 = vmatpush1.msra.mxu0 0.0
    %1157 = vmatprep.subr.mxu0 0.0
    %1158 = vmatpush1.msra.mxu0 0.0
    %1159 = vmatprep.subr.mxu0 0.0
    %1160 = vmatpush1.msra.mxu0 0.0
    %1161 = vmatprep.subr.mxu0 0.0
    %1162 = vmatpush1.msra.mxu0 0.0
    %1163 = vmatprep.subr.mxu0 0.0
    %1164 = vmatpush1.msra.mxu0 0.0
    %1165 = vmatprep.subr.mxu0 0.0
    %1166 = vmatpush1.msra.mxu0 0.0
    %1167 = vmatprep.subr.mxu0 0.0
    %1168 = vmatpush1.msra.mxu0 0.0
    %1169 = vmatprep.subr.mxu0 0.0
    %1170 = vmatpush1.msra.mxu0 0.0
    %1171 = vmatprep.subr.mxu0 0.0
    %1172 = vmatpush1.msra.mxu0 %v989
    %1173 = vmatprep.subr.mxu0 0.0
    %1174 = vmatpush1.msra.mxu0 %v988
    %1175 = vmatprep.subr.mxu0 0.0
    %1176 = vmatpush1.msra.mxu0 %v987
    %1177 = vmatprep.subr.mxu0 0.0
    %1178 = vmatpush1.msra.mxu0 %v986
    %1179 = vmatprep.subr.mxu0 0.0
    %1180 = vmatpush2.msra.mxu0 0.0
    %1181 = vmatprep.subr.mxu0 0.0
    %1182 = vmatpush2.msra.mxu0 0.0
    %1183 = vmatprep.subr.mxu0 0.0
    %1184 = vmatpush2.msra.mxu0 0.0
    %1185 = vmatprep.subr.mxu0 0.0
    %1186 = vmatpush2.msra.mxu0 0.0
    %1187 = vmatprep.subr.mxu0 0.0
    %1188 = vmatpush2.msra.mxu0 0.0
    %1189 = vmatprep.subr.mxu0 0.0
    %1190 = vmatpush2.msra.mxu0 0.0
    %1191 = vmatprep.subr.mxu0 0.0
    %1192 = vmatpush2.msra.mxu0 0.0
    %1193 = vmatprep.subr.mxu0 0.0
    %1194 = vmatpush2.msra.mxu0 0.0
    %1195 = vmatprep.subr.mxu0 0.0
    %1196 = vmatpush2.msra.mxu0 0.0
    %1197 = vmatprep.subr.mxu0 0.0
    %1198 = vmatpush2.msra.mxu0 0.0
    %1199 = vmatprep.subr.mxu0 0.0
    %1200 = vmatpush2.msra.mxu0 0.0
    %1201 = vmatprep.subr.mxu0 0.0
    %1202 = vmatpush2.msra.mxu0 0.0
    %1203 = vmatprep.subr.mxu0 0.0
    %1204 = vmatpush2.msra.mxu0 0.0
    %1205 = vmatprep.subr.mxu0 0.0
    %1206 = vmatpush2.msra.mxu0 0.0
    %1207 = vmatprep.subr.mxu0 0.0
    %1208 = vmatpush2.msra.mxu0 0.0
    %1209 = vmatprep.subr.mxu0 0.0
    %1210 = vmatpush2.msra.mxu0 0.0
    %1211 = vmatprep.mubr.f32.mxu0 0.0
    %1212 = vmatmul.mubr.f32.gmra.mxu0 %v1124
    %v1213 = vpop.f32.mrf.mxu0
    %v1214 = vadd.f32 %v1085, %v1213
    %v1215 = vpop.f32.mrf.mxu0
    %1216 = vmatprep.mubr.f32.mxu0 0.0
    %1217 = vmatmul.mubr.f32.gmra.mxu0 %v1127
    %v1218 = vpop.f32.mrf.mxu0
    %v1219 = vadd.f32 %v1090, %v1218
    %v1220 = vpop.f32.mrf.mxu0
    %1221 = vmatprep.mubr.f32.mxu0 0.0
    %1222 = vmatmul.mubr.f32.gmra.mxu0 %v1130
    %v1223 = vpop.f32.mrf.mxu0
    %v1224 = vadd.f32 %v1095, %v1223
    %v1225 = vpop.f32.mrf.mxu0
    %1226 = vmatprep.mubr.f32.mxu0 0.0
    %1227 = vmatmul.mubr.f32.gmra.mxu0 %v1133
    %v1228 = vpop.f32.mrf.mxu0
    %v1229 = vadd.f32 %v1100, %v1228
    %v1230 = vpop.f32.mrf.mxu0
    %1231 = vmatprep.mubr.f32.mxu0 0.0
    %1232 = vmatmul.mubr.f32.gmra.mxu0 %v1136
    %v1233 = vpop.f32.mrf.mxu0
    %v1234 = vadd.f32 %v1105, %v1233
    %v1235 = vpop.f32.mrf.mxu0
    %1236 = vmatprep.mubr.f32.mxu0 0.0
    %1237 = vmatmul.mubr.f32.gmra.mxu0 %v1139
    %v1238 = vpop.f32.mrf.mxu0
    %v1239 = vadd.f32 %v1110, %v1238
    %v1240 = vpop.f32.mrf.mxu0
    %1241 = vmatprep.mubr.f32.mxu0 0.0
    %1242 = vmatmul.mubr.f32.gmra.mxu0 %v1142
    %v1243 = vpop.f32.mrf.mxu0
    %v1244 = vadd.f32 %v1115, %v1243
    %v1245 = vpop.f32.mrf.mxu0
    %1246 = vmatprep.mubr.f32.mxu0 0.0
    %1247 = vmatmul.mubr.f32.gmra.mxu0 %v1145
    %v1248 = vpop.f32.mrf.mxu0
    %v1249 = vadd.f32 %v1120, %v1248
    %v1250 = vpop.f32.mrf.mxu0
    %1251 = vdwg.mxu0
    %v1252 = vld [vmem:[%s11] sm:$0x1]
    %v1254 = vlaneseq
    %v1255 = vshrl.u32 %v1254, 7
    %v1256 = vsub.s32 0, %v1255
    %v1257 = vrot.slane %v1252, %v1256
    %v1259 = vadd.f32 %v1214, %v1257
    %v1260 = vadd.f32 %v1219, %v1257
    %v1261 = vadd.f32 %v1224, %v1257
    %v1262 = vadd.f32 %v1229, %v1257
    %v1263 = vadd.f32 %v1234, %v1257
    %v1264 = vadd.f32 %v1239, %v1257
    %v1265 = vadd.f32 %v1244, %v1257
    %v1266 = vadd.f32 %v1249, %v1257
    %v1267 = vmax.f32 %v1259, 0.0
    %v1268 = vmax.f32 %v1260, 0.0
    %v1269 = vmax.f32 %v1261, 0.0
    %v1270 = vmax.f32 %v1262, 0.0
    %v1271 = vmax.f32 %v1263, 0.0
    %v1272 = vmax.f32 %v1264, 0.0
    %v1273 = vmax.f32 %v1265, 0.0
    %v1274 = vmax.f32 %v1266, 0.0
    %v1275 = vlaneseq
    %v1276 = vand.u32 %v1275, 127
    %v1277 = vld [vmem:[%s5] sm:$0xff]
    %v1278 = vld [vmem:[%s5 + $0x8] sm:$0xff]
    %1279 = vset.pattern.permute.xlu0 0
    %1280 = vperm.xlu0 %1279, %v1277
    %v1281 = vpop.permute.xlu0 %1280
    %1282 = vset.pattern.permute.xlu0 0
    %1283 = vperm.xlu0 %1282, %v1278
    %v1284 = vpop.permute.xlu0 %1283
    %vm1285 = vcmp.eq.s32.totalorder %v1276, %v1281
    %vm1286 = vcmp.eq.s32.totalorder %v1276, %v1284
    %v1287 = vsel %vm1285, 1, 0
    %v1288 = vsel %vm1286, 1, 0
    %v1289 = vcvt.s32.f32 %v1287
    %v1290 = vcvt.s32.f32 %v1288
    %v1291 = vpack.c.bf16 %v1290, %v1289
    %v1292 = vpack.c.bf16 %v1268, %v1267
    %v1293 = vpack.c.bf16 %v1270, %v1269
    %v1294 = vpack.c.bf16 %v1272, %v1271
    %v1295 = vpack.c.bf16 %v1274, %v1273
    %v1297 = vsel %vm141, %v1291, 0
    %1299 = vmatprep.subr.bf16.mxu0 0
    %1300 = vmatpush1.bf16.msra.mxu0 0
    %1301 = vmatprep.subr.bf16.mxu0 0
    %1302 = vmatpush1.bf16.msra.mxu0 0
    %1303 = vmatprep.subr.bf16.mxu0 0
    %1304 = vmatpush1.bf16.msra.mxu0 0
    %1305 = vmatprep.subr.bf16.mxu0 0
    %1306 = vmatpush1.bf16.msra.mxu0 0
    %1307 = vmatprep.subr.bf16.mxu0 0
    %1308 = vmatpush1.bf16.msra.mxu0 %v1295
    %1309 = vmatprep.subr.bf16.mxu0 0
    %1310 = vmatpush1.bf16.msra.mxu0 %v1294
    %1311 = vmatprep.subr.bf16.mxu0 0
    %1312 = vmatpush1.bf16.msra.mxu0 %v1293
    %1313 = vmatprep.subr.bf16.mxu0 0
    %1314 = vmatpush1.bf16.msra.mxu0 %v1292
    %1315 = vmatprep.subr.bf16.mxu0 0
    %1316 = vmatpush2.bf16.msra.mxu0 0
    %1317 = vmatprep.subr.bf16.mxu0 0
    %1318 = vmatpush2.bf16.msra.mxu0 0
    %1319 = vmatprep.subr.bf16.mxu0 0
    %1320 = vmatpush2.bf16.msra.mxu0 0
    %1321 = vmatprep.subr.bf16.mxu0 0
    %1322 = vmatpush2.bf16.msra.mxu0 0
    %1323 = vmatprep.subr.bf16.mxu0 0
    %1324 = vmatpush2.bf16.msra.mxu0 0
    %1325 = vmatprep.subr.bf16.mxu0 0
    %1326 = vmatpush2.bf16.msra.mxu0 0
    %1327 = vmatprep.subr.bf16.mxu0 0
    %1328 = vmatpush2.bf16.msra.mxu0 0
    %1329 = vmatprep.subr.bf16.mxu0 0
    %1330 = vmatpush2.bf16.msra.mxu0 0
    %1331 = vmatprep.mubr.bf16.mxu0 0
    %1332 = vmatmul.mubr.bf16.gmra.mxu0 %v1297
    %v1333 = vpop.f32.mrf.mxu0
    %v1334 = vadd.f32 0.0, %v1333
    %v1335 = vpop.f32.mrf.mxu0
    %v1336 = vpop.f32.mrf.mxu0
    %v1337 = vadd.f32 0.0, %v1336
    %v1338 = vpop.f32.mrf.mxu0
    %1339 = vdwg.mxu0
    %v1340 = vld [vmem:[%s12] sm:$0xff]
    %v1341 = vld [vmem:[%s12 + $0x8] sm:$0xff]
    %v1342 = vld [vmem:[%s12 + $0x10] sm:$0xff]
    %v1343 = vld [vmem:[%s12 + $0x18] sm:$0xff]
    %v1344 = vld [vmem:[%s12 + $0x20] sm:$0xff]
    %v1345 = vld [vmem:[%s12 + $0x28] sm:$0xff]
    %v1346 = vld [vmem:[%s12 + $0x30] sm:$0xff]
    %v1347 = vld [vmem:[%s12 + $0x38] sm:$0xff]
    %v1349 = vsel %vm553, %v1337, 0
    %1351 = vmatprep.subr.mxu0 0.0
    %1352 = vmatpush1.msra.mxu0 0.0
    %1353 = vmatprep.subr.mxu0 0.0
    %1354 = vmatpush1.msra.mxu0 0.0
    %1355 = vmatprep.subr.mxu0 0.0
    %1356 = vmatpush1.msra.mxu0 0.0
    %1357 = vmatprep.subr.mxu0 0.0
    %1358 = vmatpush1.msra.mxu0 0.0
    %1359 = vmatprep.subr.mxu0 0.0
    %1360 = vmatpush1.msra.mxu0 0.0
    %1361 = vmatprep.subr.mxu0 0.0
    %1362 = vmatpush1.msra.mxu0 0.0
    %1363 = vmatprep.subr.mxu0 0.0
    %1364 = vmatpush1.msra.mxu0 0.0
    %1365 = vmatprep.subr.mxu0 0.0
    %1366 = vmatpush1.msra.mxu0 0.0
    %1367 = vmatprep.subr.mxu0 0.0
    %1368 = vmatpush1.msra.mxu0 0.0
    %1369 = vmatprep.subr.mxu0 0.0
    %1370 = vmatpush1.msra.mxu0 0.0
    %1371 = vmatprep.subr.mxu0 0.0
    %1372 = vmatpush1.msra.mxu0 0.0
    %1373 = vmatprep.subr.mxu0 0.0
    %1374 = vmatpush1.msra.mxu0 0.0
    %1375 = vmatprep.subr.mxu0 0.0
    %1376 = vmatpush1.msra.mxu0 %v1347
    %1377 = vmatprep.subr.mxu0 0.0
    %1378 = vmatpush1.msra.mxu0 %v1346
    %1379 = vmatprep.subr.mxu0 0.0
    %1380 = vmatpush1.msra.mxu0 %v1345
    %1381 = vmatprep.subr.mxu0 0.0
    %1382 = vmatpush1.msra.mxu0 %v1344
    %1383 = vmatprep.subr.mxu0 0.0
    %1384 = vmatpush2.msra.mxu0 0.0
    %1385 = vmatprep.subr.mxu0 0.0
    %1386 = vmatpush2.msra.mxu0 0.0
    %1387 = vmatprep.subr.mxu0 0.0
    %1388 = vmatpush2.msra.mxu0 0.0
    %1389 = vmatprep.subr.mxu0 0.0
    %1390 = vmatpush2.msra.mxu0 0.0
    %1391 = vmatprep.subr.mxu0 0.0
    %1392 = vmatpush2.msra.mxu0 0.0
    %1393 = vmatprep.subr.mxu0 0.0
    %1394 = vmatpush2.msra.mxu0 0.0
    %1395 = vmatprep.subr.mxu0 0.0
    %1396 = vmatpush2.msra.mxu0 0.0
    %1397 = vmatprep.subr.mxu0 0.0
    %1398 = vmatpush2.msra.mxu0 0.0
    %1399 = vmatprep.subr.mxu0 0.0
    %1400 = vmatpush2.msra.mxu0 0.0
    %1401 = vmatprep.subr.mxu0 0.0
    %1402 = vmatpush2.msra.mxu0 0.0
    %1403 = vmatprep.subr.mxu0 0.0
    %1404 = vmatpush2.msra.mxu0 0.0
    %1405 = vmatprep.subr.mxu0 0.0
    %1406 = vmatpush2.msra.mxu0 0.0
    %1407 = vmatprep.subr.mxu0 0.0
    %1408 = vmatpush2.msra.mxu0 0.0
    %1409 = vmatprep.subr.mxu0 0.0
    %1410 = vmatpush2.msra.mxu0 0.0
    %1411 = vmatprep.subr.mxu0 0.0
    %1412 = vmatpush2.msra.mxu0 0.0
    %1413 = vmatprep.subr.mxu0 0.0
    %1414 = vmatpush2.msra.mxu0 0.0
    %1415 = vmatprep.mubr.f32.mxu0 0.0
    %1416 = vmatmul.mubr.f32.gmra.mxu0 %v1349
    %v1417 = vpop.f32.mrf.mxu0
    %v1418 = vadd.f32 0.0, %v1417
    %v1419 = vpop.f32.mrf.mxu0
    %1420 = vdwg.mxu0
    %v1422 = vsel %vm553, %v1334, 0
    %1424 = vmatprep.subr.mxu0 0.0
    %1425 = vmatpush1.msra.mxu0 0.0
    %1426 = vmatprep.subr.mxu0 0.0
    %1427 = vmatpush1.msra.mxu0 0.0
    %1428 = vmatprep.subr.mxu0 0.0
    %1429 = vmatpush1.msra.mxu0 0.0
    %1430 = vmatprep.subr.mxu0 0.0
    %1431 = vmatpush1.msra.mxu0 0.0
    %1432 = vmatprep.subr.mxu0 0.0
    %1433 = vmatpush1.msra.mxu0 0.0
    %1434 = vmatprep.subr.mxu0 0.0
    %1435 = vmatpush1.msra.mxu0 0.0
    %1436 = vmatprep.subr.mxu0 0.0
    %1437 = vmatpush1.msra.mxu0 0.0
    %1438 = vmatprep.subr.mxu0 0.0
    %1439 = vmatpush1.msra.mxu0 0.0
    %1440 = vmatprep.subr.mxu0 0.0
    %1441 = vmatpush1.msra.mxu0 0.0
    %1442 = vmatprep.subr.mxu0 0.0
    %1443 = vmatpush1.msra.mxu0 0.0
    %1444 = vmatprep.subr.mxu0 0.0
    %1445 = vmatpush1.msra.mxu0 0.0
    %1446 = vmatprep.subr.mxu0 0.0
    %1447 = vmatpush1.msra.mxu0 0.0
    %1448 = vmatprep.subr.mxu0 0.0
    %1449 = vmatpush1.msra.mxu0 %v1343
    %1450 = vmatprep.subr.mxu0 0.0
    %1451 = vmatpush1.msra.mxu0 %v1342
    %1452 = vmatprep.subr.mxu0 0.0
    %1453 = vmatpush1.msra.mxu0 %v1341
    %1454 = vmatprep.subr.mxu0 0.0
    %1455 = vmatpush1.msra.mxu0 %v1340
    %1456 = vmatprep.subr.mxu0 0.0
    %1457 = vmatpush2.msra.mxu0 0.0
    %1458 = vmatprep.subr.mxu0 0.0
    %1459 = vmatpush2.msra.mxu0 0.0
    %1460 = vmatprep.subr.mxu0 0.0
    %1461 = vmatpush2.msra.mxu0 0.0
    %1462 = vmatprep.subr.mxu0 0.0
    %1463 = vmatpush2.msra.mxu0 0.0
    %1464 = vmatprep.subr.mxu0 0.0
    %1465 = vmatpush2.msra.mxu0 0.0
    %1466 = vmatprep.subr.mxu0 0.0
    %1467 = vmatpush2.msra.mxu0 0.0
    %1468 = vmatprep.subr.mxu0 0.0
    %1469 = vmatpush2.msra.mxu0 0.0
    %1470 = vmatprep.subr.mxu0 0.0
    %1471 = vmatpush2.msra.mxu0 0.0
    %1472 = vmatprep.subr.mxu0 0.0
    %1473 = vmatpush2.msra.mxu0 0.0
    %1474 = vmatprep.subr.mxu0 0.0
    %1475 = vmatpush2.msra.mxu0 0.0
    %1476 = vmatprep.subr.mxu0 0.0
    %1477 = vmatpush2.msra.mxu0 0.0
    %1478 = vmatprep.subr.mxu0 0.0
    %1479 = vmatpush2.msra.mxu0 0.0
    %1480 = vmatprep.subr.mxu0 0.0
    %1481 = vmatpush2.msra.mxu0 0.0
    %1482 = vmatprep.subr.mxu0 0.0
    %1483 = vmatpush2.msra.mxu0 0.0
    %1484 = vmatprep.subr.mxu0 0.0
    %1485 = vmatpush2.msra.mxu0 0.0
    %1486 = vmatprep.subr.mxu0 0.0
    %1487 = vmatpush2.msra.mxu0 0.0
    %1488 = vmatprep.mubr.f32.mxu0 0.0
    %1489 = vmatmul.mubr.f32.gmra.mxu0 %v1422
    %v1490 = vpop.f32.mrf.mxu0
    %v1491 = vadd.f32 %v1418, %v1490
    %v1492 = vpop.f32.mrf.mxu0
    %1493 = vdwg.mxu0
    %v1494 = vld [vmem:[#allocation7] sm:$0x1]
    %v1496 = vlaneseq
    %v1497 = vshrl.u32 %v1496, 7
    %v1498 = vsub.s32 0, %v1497
    %v1499 = vrot.slane %v1494, %v1498
    %v1501 = vadd.f32 %v1491, %v1499
    %v1502 = vmax.f32 %v1501, 0.0
    %v1503 = vld [vmem:[%s14] sm:$0x1]
    %v1504 = vld [vmem:[#allocation3] sm:$0x1]
    %1506 = vset.pattern.permute.xlu0 0
    %1507 = vperm.xlu0 %1506, %v1504
    %v1508 = vpop.permute.xlu0 %1507
    %v1510 = vlaneseq
    %v1511 = vshrl.u32 %v1510, 7
    %v1512 = vsub.s32 0, %v1511
    %v1513 = vrot.slane %v1508, %v1512
    %v1515 = vsel %vm553, %v1503, 0
    %v1518 = vsel %vm553, %v1502, 0
    %1520 = vmatprep.subr.mxu0 0.0
    %1521 = vmatpush1.xpose.msra.mxu0 0.0
    %1522 = vmatprep.subr.mxu0 0.0
    %1523 = vmatpush1.xpose.msra.mxu0 0.0
    %1524 = vmatprep.subr.mxu0 0.0
    %1525 = vmatpush1.xpose.msra.mxu0 0.0
    %1526 = vmatprep.subr.mxu0 0.0
    %1527 = vmatpush1.xpose.msra.mxu0 0.0
    %1528 = vmatprep.subr.mxu0 0.0
    %1529 = vmatpush1.xpose.msra.mxu0 0.0
    %1530 = vmatprep.subr.mxu0 0.0
    %1531 = vmatpush1.xpose.msra.mxu0 0.0
    %1532 = vmatprep.subr.mxu0 0.0
    %1533 = vmatpush1.xpose.msra.mxu0 0.0
    %1534 = vmatprep.subr.mxu0 0.0
    %1535 = vmatpush1.xpose.msra.mxu0 0.0
    %1536 = vmatprep.subr.mxu0 0.0
    %1537 = vmatpush1.xpose.msra.mxu0 0.0
    %1538 = vmatprep.subr.mxu0 0.0
    %1539 = vmatpush1.xpose.msra.mxu0 0.0
    %1540 = vmatprep.subr.mxu0 0.0
    %1541 = vmatpush1.xpose.msra.mxu0 0.0
    %1542 = vmatprep.subr.mxu0 0.0
    %1543 = vmatpush1.xpose.msra.mxu0 0.0
    %1544 = vmatprep.subr.mxu0 0.0
    %1545 = vmatpush1.xpose.msra.mxu0 0.0
    %1546 = vmatprep.subr.mxu0 0.0
    %1547 = vmatpush1.xpose.msra.mxu0 0.0
    %1548 = vmatprep.subr.mxu0 0.0
    %1549 = vmatpush1.xpose.msra.mxu0 0.0
    %1550 = vmatprep.subr.mxu0 0.0
    %1551 = vmatpush1.xpose.msra.mxu0 %v1518
    %1552 = vmatprep.subr.mxu0 0.0
    %1553 = vmatpush2.xpose.msra.mxu0 0.0
    %1554 = vmatprep.subr.mxu0 0.0
    %1555 = vmatpush2.xpose.msra.mxu0 0.0
    %1556 = vmatprep.subr.mxu0 0.0
    %1557 = vmatpush2.xpose.msra.mxu0 0.0
    %1558 = vmatprep.subr.mxu0 0.0
    %1559 = vmatpush2.xpose.msra.mxu0 0.0
    %1560 = vmatprep.subr.mxu0 0.0
    %1561 = vmatpush2.xpose.msra.mxu0 0.0
    %1562 = vmatprep.subr.mxu0 0.0
    %1563 = vmatpush2.xpose.msra.mxu0 0.0
    %1564 = vmatprep.subr.mxu0 0.0
    %1565 = vmatpush2.xpose.msra.mxu0 0.0
    %1566 = vmatprep.subr.mxu0 0.0
    %1567 = vmatpush2.xpose.msra.mxu0 0.0
    %1568 = vmatprep.subr.mxu0 0.0
    %1569 = vmatpush2.xpose.msra.mxu0 0.0
    %1570 = vmatprep.subr.mxu0 0.0
    %1571 = vmatpush2.xpose.msra.mxu0 0.0
    %1572 = vmatprep.subr.mxu0 0.0
    %1573 = vmatpush2.xpose.msra.mxu0 0.0
    %1574 = vmatprep.subr.mxu0 0.0
    %1575 = vmatpush2.xpose.msra.mxu0 0.0
    %1576 = vmatprep.subr.mxu0 0.0
    %1577 = vmatpush2.xpose.msra.mxu0 0.0
    %1578 = vmatprep.subr.mxu0 0.0
    %1579 = vmatpush2.xpose.msra.mxu0 0.0
    %1580 = vmatprep.subr.mxu0 0.0
    %1581 = vmatpush2.xpose.msra.mxu0 0.0
    %1582 = vmatprep.subr.mxu0 0.0
    %1583 = vmatpush2.xpose.msra.mxu0 0.0
    %1584 = vmatprep.mubr.f32.mxu0 0.0
    %1585 = vmatmul.mubr.f32.gmra.mxu0 %v1515
    %v1586 = vpop.f32.mrf.mxu0
    %v1587 = vadd.f32 %v1513, %v1586
    %v1588 = vpop.f32.mrf.mxu0
    %1589 = vdwg.mxu0
    %v1590 = vxor.u32 %v1587, 2147483648
    %v1591 = vmul.f32 %v1590, 1.442695
    %v1592 = vpow.pop %v1591
    %v1593 = vadd.f32 %v1592, 1.0
    %v1594 = vrcp.pop %v1593
    %v1595 = vmul.f32 1.0, %v1594
    %vm1596 = vcmask 57344
    %1597 = vst.msk [vmem:[#allocation9] sm:$0x1] %vm1596, %v1595
    // Predicated region
    $region74: #{tgn_forward.1} parent=1 // pred_check
      _
    $region75: #{tgn_forward.1} parent=1 // pred_check_branch
      %1599 = sbr.rel (0) target = $region77
    $region76: #{tgn_forward.1} parent=1 // pred_region
      _
    $region77: #{tgn_forward.1} parent=1 // pred_fallthru
      _
    // Predicated region
    $region78: #{tgn_forward.1} parent=1 // pred_check
      _
    $region79: #{tgn_forward.1} parent=1 // pred_check_branch
      %1601 = sbr.rel (0) target = $region81
    $region80: #{tgn_forward.1} parent=1 // pred_region
      %s1603 = ssub.s32 16, 16
      %1604 = vsyncadd [#allocation6], %s1603
      %s1606 = sshll.u32 [#allocation9], 4
      %s1607 = int_to_ptr.vmem [resolvable:$true] %s1606
      %1609 = dma.vmem_to_hbm [thread:$0]  %s1607, 16, %s17, [#allocation6]
    $region81: #{tgn_forward.1} parent=1 // pred_fallthru
      _
    // Predicated region
    $region82: #{tgn_forward.1} parent=1 // pred_check
      _
    $region83: #{tgn_forward.1} parent=1 // pred_check_branch
      %1611 = sbr.rel (0) target = $region85
    $region84: #{tgn_forward.1} parent=1 // pred_region
      _
    $region85: #{tgn_forward.1} parent=1 // pred_fallthru
      _
    // Predicated region
    $region86: #{tgn_forward.1} parent=1 // pred_check
      _
    $region87: #{tgn_forward.1} parent=1 // pred_check_branch
      %1613 = sbr.rel (0) target = $region89
    $region88: #{tgn_forward.1} parent=1 // pred_region
      %1614 = dma.done [#allocation6], 16
    $region89: #{tgn_forward.1} parent=1 // pred_fallthru
      _
    %1615 = vsyncpa [#allocation5], 1
    %1616 = vsyncpa [#allocation8], 1
    %1617 = vsyncpa [#allocation6], 1

</llo_original>
